<compile_context>
chip_gen: v7x
topology: tpu7x:2x2x1
jax: 0.10.0
libtpu: 0.0.40
codegen_flags: <defaults>
</compile_context>

<pallas_src>
import functools

import jax
import jax.numpy as jnp
from jax.experimental import pallas as pl
from jax.experimental.pallas import tpu as pltpu


def _round_up(x, m):
    return (x + m - 1) // m * m


def _rbm_kernel(v_ref, w_ref, wt_ref, hb_ref, vb_ref, rh_ref, rv_ref,
                vk_ref, *, k):
    tile_b = v_ref.shape[0]
    n_hin, n_vis = w_ref.shape

    W = w_ref[...]        # (n_hin, n_vis)  bf16
    W_T = wt_ref[...]     # (n_vis, n_hin)  bf16

    # Hoist the (1, n) -> (tile_b, n) broadcasts out of the unrolled loop
    # (JAX does not CSE broadcast_in_dim).
    h_bias = jnp.broadcast_to(hb_ref[...], (tile_b, n_hin))   # f32
    v_bias = jnp.broadcast_to(vb_ref[...], (tile_b, n_vis))   # f32

    def v_to_h(vv_bf16, step):
        # F.linear(v, W, h_bias) = v @ W.T + h_bias, using pre-transposed W_T.
        pre = jnp.dot(vv_bf16, W_T, preferred_element_type=jnp.float32) + h_bias
        p_h = jax.nn.sigmoid(pre)
        u = rh_ref[step]                          # (tile_b, n_hin) f32
        return jnp.where(p_h > u, 1.0, 0.0)       # f32 sample in {0, 1}

    def h_to_v(hh, step):
        # F.linear(h, W.t(), v_bias) = h @ W + v_bias.
        pre = jnp.dot(hh.astype(jnp.bfloat16), W,
                      preferred_element_type=jnp.float32) + v_bias
        p_v = jax.nn.sigmoid(pre)
        u = rv_ref[step]                          # (tile_b, n_vis) f32
        return jnp.where(p_v > u, 1.0, 0.0)

    # {0,1} samples are exact in bf16; bf16 feeds the MXU at double rate.
    h = v_to_h(v_ref[...].astype(jnp.bfloat16), 0)
    v_ = v_ref[...]                 # k >= 1 is asserted in the wrapper
    for i in range(k):              # short fixed trip count: keep unrolled
        v_ = h_to_v(h, i)
        h = v_to_h(v_.astype(jnp.bfloat16), i + 1)

    vk_ref[...] = v_.astype(vk_ref.dtype)


def rbm_forward(v, W, h_bias, v_bias, key, *, k=5, tile_b=None):
    """Runs the RBM Gibbs chain. Returns (v, v_k) like the PyTorch forward."""
    assert k >= 1, "k must be >= 1 (the module's forward assumes this)"
    v = jnp.asarray(v, jnp.float32)
    W = jnp.asarray(W, jnp.float32)
    B, n_vis = v.shape
    n_hin = W.shape[0]
    assert W.shape == (n_hin, n_vis)

    # Lane-align both feature dims (last dim of every tile multiple of 128).
    n_vis_p = _round_up(n_vis, 128)
    n_hin_p = _round_up(n_hin, 128)

    # Batch tile: multiple of 8 sublanes, default capped at 256 rows.
    if tile_b is None:
        tile_b = min(_round_up(B, 8), 256)
    tile_b = min(tile_b, _round_up(B, 8))
    assert tile_b % 8 == 0
    B_p = _round_up(B, tile_b)

    # Zero-pad weights; padded units get a huge negative bias so sigmoid == 0.0
    # exactly and they always sample to 0 (never contaminate live columns).
    NEG = jnp.float32(-1e9)
    W_p = jnp.zeros((n_hin_p, n_vis_p), jnp.float32).at[:n_hin, :n_vis].set(W)
    hb_p = jnp.full((1, n_hin_p), NEG, jnp.float32).at[0, :n_hin].set(
        jnp.asarray(h_bias, jnp.float32))
    vb_p = jnp.full((1, n_vis_p), NEG, jnp.float32).at[0, :n_vis].set(
        jnp.asarray(v_bias, jnp.float32))
    v_p = jnp.zeros((B_p, n_vis_p), jnp.float32).at[:B, :n_vis].set(v)

    # Pre-transposed bf16 weight copies (no in-loop transpose, half the DMA).
    W_bf = W_p.astype(jnp.bfloat16)
    WT_bf = W_p.T.astype(jnp.bfloat16)

    # Uniform randoms for all 2k+1 sampling steps, streamed in as inputs.
    kh, kv = jax.random.split(key)
    rand_h = jax.random.uniform(kh, (k + 1, B_p, n_hin_p), dtype=jnp.float32)
    rand_v = jax.random.uniform(kv, (k, B_p, n_vis_p), dtype=jnp.float32)

    grid = (B_p // tile_b,)
    kernel = functools.partial(_rbm_kernel, k=k)
    const = lambda i: (0, 0)

    vk_p = pl.pallas_call(
        kernel,
        out_shape=jax.ShapeDtypeStruct((B_p, n_vis_p), jnp.float32),
        grid=grid,
        in_specs=[
            pl.BlockSpec((tile_b, n_vis_p), lambda i: (i, 0)),            # v
            pl.BlockSpec((n_hin_p, n_vis_p), const),                      # W
            pl.BlockSpec((n_vis_p, n_hin_p), const),                      # W^T
            pl.BlockSpec((1, n_hin_p), const),                            # h_bias
            pl.BlockSpec((1, n_vis_p), const),                            # v_bias
            pl.BlockSpec((k + 1, tile_b, n_hin_p), lambda i: (0, i, 0)),  # rand_h
            pl.BlockSpec((k, tile_b, n_vis_p), lambda i: (0, i, 0)),      # rand_v
        ],
        out_specs=pl.BlockSpec((tile_b, n_vis_p), lambda i: (i, 0)),
        compiler_params=pltpu.CompilerParams(
            dimension_semantics=("parallel",)),
    )(v_p, W_bf, WT_bf, hb_p, vb_p, rand_h, rand_v)

    # v is returned unchanged (no kernel writeback); slice padding off v_k.
    return v, vk_p[:B, :n_vis]


if __name__ == "__main__":
    # Small, deliberately non-lane-aligned sizes to exercise the padding path
    # (original module defaults: n_vis=784, n_hin=500, k=5).
    B, n_vis, n_hin, k = 64, 200, 120, 5

    root = jax.random.PRNGKey(0)
    k_w, k_v, k_run = jax.random.split(root, 3)

    # Match the module's __init__: W ~ 0.01 * N(0,1), biases zero.
    W = 0.01 * jax.random.normal(k_w, (n_hin, n_vis), dtype=jnp.float32)
    v_bias = jnp.zeros((n_vis,), jnp.float32)
    h_bias = jnp.zeros((n_hin,), jnp.float32)

    # Binarized visible input ("pixels").
    v = (jax.random.uniform(k_v, (B, n_vis)) > 0.5).astype(jnp.float32)

    v_out, v_k = rbm_forward(v, W, h_bias, v_bias, k_run, k=k, tile_b=32)
    jax.block_until_ready((v_out, v_k))

    assert v_out.shape == (B, n_vis) and v_k.shape == (B, n_vis)
    assert bool(jnp.all(v_out == v))
    # Output of the Gibbs chain is a binary sample.
    assert bool(jnp.all((v_k == 0.0) | (v_k == 1.0)))
    # With W ~ 0.01*N(0,1) and zero biases, activation probabilities are ~0.5.
    mean_vk = float(jnp.mean(v_k))
    assert 0.3 < mean_vk < 0.7, mean_vk

    print("KERNEL_OK")
</pallas_src>

<mosaic_0001>
module attributes {stable_mosaic.version = 11 : i64} {
  func.func @_rbm_kernel(%arg0: i32, %arg1: memref<32x256xf32, #tpu.memory_space<vmem>>, %arg2: memref<128x256xbf16, #tpu.memory_space<vmem>>, %arg3: memref<256x128xbf16, #tpu.memory_space<vmem>>, %arg4: memref<1x128xf32, #tpu.memory_space<vmem>>, %arg5: memref<1x256xf32, #tpu.memory_space<vmem>>, %arg6: memref<6x32x128xf32, #tpu.memory_space<vmem>>, %arg7: memref<5x32x256xf32, #tpu.memory_space<vmem>>, %arg8: memref<32x256xf32, #tpu.memory_space<vmem>>) attributes {dimension_semantics = [#tpu.dimension_semantics<parallel>], iteration_bounds = array<i64: 2>, scalar_prefetch = 0 : i64, scratch_operands = 0 : i64, tpu.core_type = #tpu.core_type<tc>, window_params = [{transform_indices = @transform_0, window_bounds = array<i64: 32, 256>}, {pipeline_mode = #tpu.pipeline_mode<synchronous>, transform_indices = @transform_1, window_bounds = array<i64: 128, 256>}, {pipeline_mode = #tpu.pipeline_mode<synchronous>, transform_indices = @transform_2, window_bounds = array<i64: 256, 128>}, {pipeline_mode = #tpu.pipeline_mode<synchronous>, transform_indices = @transform_3, window_bounds = array<i64: 1, 128>}, {pipeline_mode = #tpu.pipeline_mode<synchronous>, transform_indices = @transform_4, window_bounds = array<i64: 1, 256>}, {transform_indices = @transform_5, window_bounds = array<i64: 6, 32, 128>}, {transform_indices = @transform_6, window_bounds = array<i64: 5, 32, 256>}, {transform_indices = @transform_7, window_bounds = array<i64: 32, 256>}]} {
    %c0 = arith.constant 0 : index
    %c0_0 = arith.constant 0 : index
    %0 = vector.load %arg2[%c0, %c0_0] : memref<128x256xbf16, #tpu.memory_space<vmem>>, vector<128x256xbf16>
    %c0_1 = arith.constant 0 : index
    %c0_2 = arith.constant 0 : index
    %1 = vector.load %arg3[%c0_1, %c0_2] : memref<256x128xbf16, #tpu.memory_space<vmem>>, vector<256x128xbf16>
    %c0_3 = arith.constant 0 : index
    %c0_4 = arith.constant 0 : index
    %2 = vector.load %arg4[%c0_3, %c0_4] : memref<1x128xf32, #tpu.memory_space<vmem>>, vector<1x128xf32>
    %3 = vector.shape_cast %2 : vector<1x128xf32> to vector<1x128xf32>
    %4 = vector.broadcast %3 : vector<1x128xf32> to vector<32x128xf32>
    %c0_5 = arith.constant 0 : index
    %c0_6 = arith.constant 0 : index
    %5 = vector.load %arg5[%c0_5, %c0_6] : memref<1x256xf32, #tpu.memory_space<vmem>>, vector<1x256xf32>
    %6 = vector.shape_cast %5 : vector<1x256xf32> to vector<1x256xf32>
    %7 = vector.broadcast %6 : vector<1x256xf32> to vector<32x256xf32>
    %c0_7 = arith.constant 0 : index
    %c0_8 = arith.constant 0 : index
    %8 = vector.load %arg1[%c0_7, %c0_8] : memref<32x256xf32, #tpu.memory_space<vmem>>, vector<32x256xf32>
    %9 = arith.truncf %8 : vector<32x256xf32> to vector<32x256xbf16>
    %cst = arith.constant dense<0.000000e+00> : vector<32x128xf32>
    %10 = tpu.matmul %9, %1, %cst {dimension_numbers = #tpu.dot_dimension_numbers<[1], [0], [0], [1], [0, 0, 1, 1], [], []>} : vector<32x256xbf16>, vector<256x128xbf16>, vector<32x128xf32> -> vector<32x128xf32>
    %11 = arith.addf %10, %4 : vector<32x128xf32>
    %12 = arith.negf %11 : vector<32x128xf32>
    %13 = math.exp %12 : vector<32x128xf32>
    %cst_9 = arith.constant 1.000000e+00 : f32
    %14 = vector.broadcast %cst_9 : f32 to vector<32x128xf32>
    %15 = arith.addf %14, %13 : vector<32x128xf32>
    %16 = arith.divf %14, %15 : vector<32x128xf32>
    %c0_10 = arith.constant 0 : index
    %c0_11 = arith.constant 0 : index
    %c0_12 = arith.constant 0 : index
    %17 = vector.load %arg6[%c0_10, %c0_11, %c0_12] : memref<6x32x128xf32, #tpu.memory_space<vmem>>, vector<1x32x128xf32>
    %18 = vector.shape_cast %17 : vector<1x32x128xf32> to vector<32x128xf32>
    %19 = arith.cmpf ogt, %16, %18 : vector<32x128xf32>
    %cst_13 = arith.constant 1.000000e+00 : f32
    %cst_14 = arith.constant 0.000000e+00 : f32
    %20 = vector.broadcast %cst_13 : f32 to vector<32x128xf32>
    %21 = vector.broadcast %cst_14 : f32 to vector<32x128xf32>
    %22 = arith.select %19, %20, %21 : vector<32x128xi1>, vector<32x128xf32>
    %23 = arith.truncf %22 : vector<32x128xf32> to vector<32x128xbf16>
    %cst_15 = arith.constant dense<0.000000e+00> : vector<32x256xf32>
    %24 = tpu.matmul %23, %0, %cst_15 {dimension_numbers = #tpu.dot_dimension_numbers<[1], [0], [0], [1], [0, 0, 1, 1], [], []>} : vector<32x128xbf16>, vector<128x256xbf16>, vector<32x256xf32> -> vector<32x256xf32>
    %25 = arith.addf %24, %7 : vector<32x256xf32>
    %26 = arith.negf %25 : vector<32x256xf32>
    %27 = math.exp %26 : vector<32x256xf32>
    %cst_16 = arith.constant 1.000000e+00 : f32
    %28 = vector.broadcast %cst_16 : f32 to vector<32x256xf32>
    %29 = arith.addf %28, %27 : vector<32x256xf32>
    %30 = arith.divf %28, %29 : vector<32x256xf32>
    %c0_17 = arith.constant 0 : index
    %c0_18 = arith.constant 0 : index
    %c0_19 = arith.constant 0 : index
    %31 = vector.load %arg7[%c0_17, %c0_18, %c0_19] : memref<5x32x256xf32, #tpu.memory_space<vmem>>, vector<1x32x256xf32>
    %32 = vector.shape_cast %31 : vector<1x32x256xf32> to vector<32x256xf32>
    %33 = arith.cmpf ogt, %30, %32 : vector<32x256xf32>
    %cst_20 = arith.constant 1.000000e+00 : f32
    %cst_21 = arith.constant 0.000000e+00 : f32
    %34 = vector.broadcast %cst_20 : f32 to vector<32x256xf32>
    %35 = vector.broadcast %cst_21 : f32 to vector<32x256xf32>
    %36 = arith.select %33, %34, %35 : vector<32x256xi1>, vector<32x256xf32>
    %37 = arith.truncf %36 : vector<32x256xf32> to vector<32x256xbf16>
    %cst_22 = arith.constant dense<0.000000e+00> : vector<32x128xf32>
    %38 = tpu.matmul %37, %1, %cst_22 {dimension_numbers = #tpu.dot_dimension_numbers<[1], [0], [0], [1], [0, 0, 1, 1], [], []>} : vector<32x256xbf16>, vector<256x128xbf16>, vector<32x128xf32> -> vector<32x128xf32>
    %39 = arith.addf %38, %4 : vector<32x128xf32>
    %40 = arith.negf %39 : vector<32x128xf32>
    %41 = math.exp %40 : vector<32x128xf32>
    %cst_23 = arith.constant 1.000000e+00 : f32
    %42 = vector.broadcast %cst_23 : f32 to vector<32x128xf32>
    %43 = arith.addf %42, %41 : vector<32x128xf32>
    %44 = arith.divf %42, %43 : vector<32x128xf32>
    %c1 = arith.constant 1 : index
    %c0_24 = arith.constant 0 : index
    %c0_25 = arith.constant 0 : index
    %45 = vector.load %arg6[%c1, %c0_24, %c0_25] : memref<6x32x128xf32, #tpu.memory_space<vmem>>, vector<1x32x128xf32>
    %46 = vector.shape_cast %45 : vector<1x32x128xf32> to vector<32x128xf32>
    %47 = arith.cmpf ogt, %44, %46 : vector<32x128xf32>
    %cst_26 = arith.constant 1.000000e+00 : f32
    %cst_27 = arith.constant 0.000000e+00 : f32
    %48 = vector.broadcast %cst_26 : f32 to vector<32x128xf32>
    %49 = vector.broadcast %cst_27 : f32 to vector<32x128xf32>
    %50 = arith.select %47, %48, %49 : vector<32x128xi1>, vector<32x128xf32>
    %51 = arith.truncf %50 : vector<32x128xf32> to vector<32x128xbf16>
    %cst_28 = arith.constant dense<0.000000e+00> : vector<32x256xf32>
    %52 = tpu.matmul %51, %0, %cst_28 {dimension_numbers = #tpu.dot_dimension_numbers<[1], [0], [0], [1], [0, 0, 1, 1], [], []>} : vector<32x128xbf16>, vector<128x256xbf16>, vector<32x256xf32> -> vector<32x256xf32>
    %53 = arith.addf %52, %7 : vector<32x256xf32>
    %54 = arith.negf %53 : vector<32x256xf32>
    %55 = math.exp %54 : vector<32x256xf32>
    %cst_29 = arith.constant 1.000000e+00 : f32
    %56 = vector.broadcast %cst_29 : f32 to vector<32x256xf32>
    %57 = arith.addf %56, %55 : vector<32x256xf32>
    %58 = arith.divf %56, %57 : vector<32x256xf32>
    %c1_30 = arith.constant 1 : index
    %c0_31 = arith.constant 0 : index
    %c0_32 = arith.constant 0 : index
    %59 = vector.load %arg7[%c1_30, %c0_31, %c0_32] : memref<5x32x256xf32, #tpu.memory_space<vmem>>, vector<1x32x256xf32>
    %60 = vector.shape_cast %59 : vector<1x32x256xf32> to vector<32x256xf32>
    %61 = arith.cmpf ogt, %58, %60 : vector<32x256xf32>
    %cst_33 = arith.constant 1.000000e+00 : f32
    %cst_34 = arith.constant 0.000000e+00 : f32
    %62 = vector.broadcast %cst_33 : f32 to vector<32x256xf32>
    %63 = vector.broadcast %cst_34 : f32 to vector<32x256xf32>
    %64 = arith.select %61, %62, %63 : vector<32x256xi1>, vector<32x256xf32>
    %65 = arith.truncf %64 : vector<32x256xf32> to vector<32x256xbf16>
    %cst_35 = arith.constant dense<0.000000e+00> : vector<32x128xf32>
    %66 = tpu.matmul %65, %1, %cst_35 {dimension_numbers = #tpu.dot_dimension_numbers<[1], [0], [0], [1], [0, 0, 1, 1], [], []>} : vector<32x256xbf16>, vector<256x128xbf16>, vector<32x128xf32> -> vector<32x128xf32>
    %67 = arith.addf %66, %4 : vector<32x128xf32>
    %68 = arith.negf %67 : vector<32x128xf32>
    %69 = math.exp %68 : vector<32x128xf32>
    %cst_36 = arith.constant 1.000000e+00 : f32
    %70 = vector.broadcast %cst_36 : f32 to vector<32x128xf32>
    %71 = arith.addf %70, %69 : vector<32x128xf32>
    %72 = arith.divf %70, %71 : vector<32x128xf32>
    %c2 = arith.constant 2 : index
    %c0_37 = arith.constant 0 : index
    %c0_38 = arith.constant 0 : index
    %73 = vector.load %arg6[%c2, %c0_37, %c0_38] : memref<6x32x128xf32, #tpu.memory_space<vmem>>, vector<1x32x128xf32>
    %74 = vector.shape_cast %73 : vector<1x32x128xf32> to vector<32x128xf32>
    %75 = arith.cmpf ogt, %72, %74 : vector<32x128xf32>
    %cst_39 = arith.constant 1.000000e+00 : f32
    %cst_40 = arith.constant 0.000000e+00 : f32
    %76 = vector.broadcast %cst_39 : f32 to vector<32x128xf32>
    %77 = vector.broadcast %cst_40 : f32 to vector<32x128xf32>
    %78 = arith.select %75, %76, %77 : vector<32x128xi1>, vector<32x128xf32>
    %79 = arith.truncf %78 : vector<32x128xf32> to vector<32x128xbf16>
    %cst_41 = arith.constant dense<0.000000e+00> : vector<32x256xf32>
    %80 = tpu.matmul %79, %0, %cst_41 {dimension_numbers = #tpu.dot_dimension_numbers<[1], [0], [0], [1], [0, 0, 1, 1], [], []>} : vector<32x128xbf16>, vector<128x256xbf16>, vector<32x256xf32> -> vector<32x256xf32>
    %81 = arith.addf %80, %7 : vector<32x256xf32>
    %82 = arith.negf %81 : vector<32x256xf32>
    %83 = math.exp %82 : vector<32x256xf32>
    %cst_42 = arith.constant 1.000000e+00 : f32
    %84 = vector.broadcast %cst_42 : f32 to vector<32x256xf32>
    %85 = arith.addf %84, %83 : vector<32x256xf32>
    %86 = arith.divf %84, %85 : vector<32x256xf32>
    %c2_43 = arith.constant 2 : index
    %c0_44 = arith.constant 0 : index
    %c0_45 = arith.constant 0 : index
    %87 = vector.load %arg7[%c2_43, %c0_44, %c0_45] : memref<5x32x256xf32, #tpu.memory_space<vmem>>, vector<1x32x256xf32>
    %88 = vector.shape_cast %87 : vector<1x32x256xf32> to vector<32x256xf32>
    %89 = arith.cmpf ogt, %86, %88 : vector<32x256xf32>
    %cst_46 = arith.constant 1.000000e+00 : f32
    %cst_47 = arith.constant 0.000000e+00 : f32
    %90 = vector.broadcast %cst_46 : f32 to vector<32x256xf32>
    %91 = vector.broadcast %cst_47 : f32 to vector<32x256xf32>
    %92 = arith.select %89, %90, %91 : vector<32x256xi1>, vector<32x256xf32>
    %93 = arith.truncf %92 : vector<32x256xf32> to vector<32x256xbf16>
    %cst_48 = arith.constant dense<0.000000e+00> : vector<32x128xf32>
    %94 = tpu.matmul %93, %1, %cst_48 {dimension_numbers = #tpu.dot_dimension_numbers<[1], [0], [0], [1], [0, 0, 1, 1], [], []>} : vector<32x256xbf16>, vector<256x128xbf16>, vector<32x128xf32> -> vector<32x128xf32>
    %95 = arith.addf %94, %4 : vector<32x128xf32>
    %96 = arith.negf %95 : vector<32x128xf32>
    %97 = math.exp %96 : vector<32x128xf32>
    %cst_49 = arith.constant 1.000000e+00 : f32
    %98 = vector.broadcast %cst_49 : f32 to vector<32x128xf32>
    %99 = arith.addf %98, %97 : vector<32x128xf32>
    %100 = arith.divf %98, %99 : vector<32x128xf32>
    %c3 = arith.constant 3 : index
    %c0_50 = arith.constant 0 : index
    %c0_51 = arith.constant 0 : index
    %101 = vector.load %arg6[%c3, %c0_50, %c0_51] : memref<6x32x128xf32, #tpu.memory_space<vmem>>, vector<1x32x128xf32>
    %102 = vector.shape_cast %101 : vector<1x32x128xf32> to vector<32x128xf32>
    %103 = arith.cmpf ogt, %100, %102 : vector<32x128xf32>
    %cst_52 = arith.constant 1.000000e+00 : f32
    %cst_53 = arith.constant 0.000000e+00 : f32
    %104 = vector.broadcast %cst_52 : f32 to vector<32x128xf32>
    %105 = vector.broadcast %cst_53 : f32 to vector<32x128xf32>
    %106 = arith.select %103, %104, %105 : vector<32x128xi1>, vector<32x128xf32>
    %107 = arith.truncf %106 : vector<32x128xf32> to vector<32x128xbf16>
    %cst_54 = arith.constant dense<0.000000e+00> : vector<32x256xf32>
    %108 = tpu.matmul %107, %0, %cst_54 {dimension_numbers = #tpu.dot_dimension_numbers<[1], [0], [0], [1], [0, 0, 1, 1], [], []>} : vector<32x128xbf16>, vector<128x256xbf16>, vector<32x256xf32> -> vector<32x256xf32>
    %109 = arith.addf %108, %7 : vector<32x256xf32>
    %110 = arith.negf %109 : vector<32x256xf32>
    %111 = math.exp %110 : vector<32x256xf32>
    %cst_55 = arith.constant 1.000000e+00 : f32
    %112 = vector.broadcast %cst_55 : f32 to vector<32x256xf32>
    %113 = arith.addf %112, %111 : vector<32x256xf32>
    %114 = arith.divf %112, %113 : vector<32x256xf32>
    %c3_56 = arith.constant 3 : index
    %c0_57 = arith.constant 0 : index
    %c0_58 = arith.constant 0 : index
    %115 = vector.load %arg7[%c3_56, %c0_57, %c0_58] : memref<5x32x256xf32, #tpu.memory_space<vmem>>, vector<1x32x256xf32>
    %116 = vector.shape_cast %115 : vector<1x32x256xf32> to vector<32x256xf32>
    %117 = arith.cmpf ogt, %114, %116 : vector<32x256xf32>
    %cst_59 = arith.constant 1.000000e+00 : f32
    %cst_60 = arith.constant 0.000000e+00 : f32
    %118 = vector.broadcast %cst_59 : f32 to vector<32x256xf32>
    %119 = vector.broadcast %cst_60 : f32 to vector<32x256xf32>
    %120 = arith.select %117, %118, %119 : vector<32x256xi1>, vector<32x256xf32>
    %121 = arith.truncf %120 : vector<32x256xf32> to vector<32x256xbf16>
    %cst_61 = arith.constant dense<0.000000e+00> : vector<32x128xf32>
    %122 = tpu.matmul %121, %1, %cst_61 {dimension_numbers = #tpu.dot_dimension_numbers<[1], [0], [0], [1], [0, 0, 1, 1], [], []>} : vector<32x256xbf16>, vector<256x128xbf16>, vector<32x128xf32> -> vector<32x128xf32>
    %123 = arith.addf %122, %4 : vector<32x128xf32>
    %124 = arith.negf %123 : vector<32x128xf32>
    %125 = math.exp %124 : vector<32x128xf32>
    %cst_62 = arith.constant 1.000000e+00 : f32
    %126 = vector.broadcast %cst_62 : f32 to vector<32x128xf32>
    %127 = arith.addf %126, %125 : vector<32x128xf32>
    %128 = arith.divf %126, %127 : vector<32x128xf32>
    %c4 = arith.constant 4 : index
    %c0_63 = arith.constant 0 : index
    %c0_64 = arith.constant 0 : index
    %129 = vector.load %arg6[%c4, %c0_63, %c0_64] : memref<6x32x128xf32, #tpu.memory_space<vmem>>, vector<1x32x128xf32>
    %130 = vector.shape_cast %129 : vector<1x32x128xf32> to vector<32x128xf32>
    %131 = arith.cmpf ogt, %128, %130 : vector<32x128xf32>
    %cst_65 = arith.constant 1.000000e+00 : f32
    %cst_66 = arith.constant 0.000000e+00 : f32
    %132 = vector.broadcast %cst_65 : f32 to vector<32x128xf32>
    %133 = vector.broadcast %cst_66 : f32 to vector<32x128xf32>
    %134 = arith.select %131, %132, %133 : vector<32x128xi1>, vector<32x128xf32>
    %135 = arith.truncf %134 : vector<32x128xf32> to vector<32x128xbf16>
    %cst_67 = arith.constant dense<0.000000e+00> : vector<32x256xf32>
    %136 = tpu.matmul %135, %0, %cst_67 {dimension_numbers = #tpu.dot_dimension_numbers<[1], [0], [0], [1], [0, 0, 1, 1], [], []>} : vector<32x128xbf16>, vector<128x256xbf16>, vector<32x256xf32> -> vector<32x256xf32>
    %137 = arith.addf %136, %7 : vector<32x256xf32>
    %138 = arith.negf %137 : vector<32x256xf32>
    %139 = math.exp %138 : vector<32x256xf32>
    %cst_68 = arith.constant 1.000000e+00 : f32
    %140 = vector.broadcast %cst_68 : f32 to vector<32x256xf32>
    %141 = arith.addf %140, %139 : vector<32x256xf32>
    %142 = arith.divf %140, %141 : vector<32x256xf32>
    %c4_69 = arith.constant 4 : index
    %c0_70 = arith.constant 0 : index
    %c0_71 = arith.constant 0 : index
    %143 = vector.load %arg7[%c4_69, %c0_70, %c0_71] : memref<5x32x256xf32, #tpu.memory_space<vmem>>, vector<1x32x256xf32>
    %144 = vector.shape_cast %143 : vector<1x32x256xf32> to vector<32x256xf32>
    %145 = arith.cmpf ogt, %142, %144 : vector<32x256xf32>
    %cst_72 = arith.constant 1.000000e+00 : f32
    %cst_73 = arith.constant 0.000000e+00 : f32
    %146 = vector.broadcast %cst_72 : f32 to vector<32x256xf32>
    %147 = vector.broadcast %cst_73 : f32 to vector<32x256xf32>
    %148 = arith.select %145, %146, %147 : vector<32x256xi1>, vector<32x256xf32>
    %c0_74 = arith.constant 0 : index
    %c0_75 = arith.constant 0 : index
    %149 = vector.load %arg8[%c0_74, %c0_75] : memref<32x256xf32, #tpu.memory_space<vmem>>, vector<32x256xf32>
    tpu.vector_store %arg8[%c0_74, %c0_75], %148 {strides = array<i32>} : memref<32x256xf32, #tpu.memory_space<vmem>>, vector<32x256xf32>,
    return
  }
  func.func @transform_0(%arg0: i32) -> (i32, i32) {
    %c0_i32 = arith.constant 0 : i32
    %c0_i32_0 = arith.constant 0 : i32
    return %arg0, %c0_i32 : i32, i32
  }
  func.func @transform_1(%arg0: i32) -> (i32, i32) {
    %c0_i32 = arith.constant 0 : i32
    %c0_i32_0 = arith.constant 0 : i32
    %c0_i32_1 = arith.constant 0 : i32
    return %c0_i32, %c0_i32_0 : i32, i32
  }
  func.func @transform_2(%arg0: i32) -> (i32, i32) {
    %c0_i32 = arith.constant 0 : i32
    %c0_i32_0 = arith.constant 0 : i32
    %c0_i32_1 = arith.constant 0 : i32
    return %c0_i32, %c0_i32_0 : i32, i32
  }
  func.func @transform_3(%arg0: i32) -> (i32, i32) {
    %c0_i32 = arith.constant 0 : i32
    %c0_i32_0 = arith.constant 0 : i32
    %c0_i32_1 = arith.constant 0 : i32
    return %c0_i32, %c0_i32_0 : i32, i32
  }
  func.func @transform_4(%arg0: i32) -> (i32, i32) {
    %c0_i32 = arith.constant 0 : i32
    %c0_i32_0 = arith.constant 0 : i32
    %c0_i32_1 = arith.constant 0 : i32
    return %c0_i32, %c0_i32_0 : i32, i32
  }
  func.func @transform_5(%arg0: i32) -> (i32, i32, i32) {
    %c0_i32 = arith.constant 0 : i32
    %c0_i32_0 = arith.constant 0 : i32
    %c0_i32_1 = arith.constant 0 : i32
    return %c0_i32, %arg0, %c0_i32_0 : i32, i32, i32
  }
  func.func @transform_6(%arg0: i32) -> (i32, i32, i32) {
    %c0_i32 = arith.constant 0 : i32
    %c0_i32_0 = arith.constant 0 : i32
    %c0_i32_1 = arith.constant 0 : i32
    return %c0_i32, %arg0, %c0_i32_0 : i32, i32, i32
  }
  func.func @transform_7(%arg0: i32) -> (i32, i32) {
    %c0_i32 = arith.constant 0 : i32
    %c0_i32_0 = arith.constant 0 : i32
    return %arg0, %c0_i32 : i32, i32
  }
}

</mosaic_0001>

<llo_original>
// kernel: tpu_custom_call.1
$region0: #{tpu_custom_call.1}
  #allocation0 [shape = 'u32[]', space=smem, size = 0x4, offset = 0x4, fixed_abs, tag = 'smem constant byte address 0x4 - core index']
  #allocation1 [shape = 'u32[144,128]{1,0:T(1,128)}', space=vmem, size = 0x12000, scoped, tag = 'internal scratch']
  #allocation12 [shape = 's32[]', space=sflag, size = 0x4, offset = 0, fixed_abs, tag = 'sflag constant byte address 0x0 - dummy sync flag']
  #allocation14 [shape = 's32[]', space=sflag, size = 0x4, offset = 0, fixed_abs, tag = 'sflag constant byte address 0x0 - dummy sync flag']
  %s0 = inlined_call_operand.hbm [shape: f32[64,256], index: 0, kind: input, shape index: {}]
  %s1 = inlined_call_operand.hbm [shape: bf16[128,256], index: 1, kind: input, shape index: {}]
  %s2 = inlined_call_operand.hbm [shape: bf16[256,128], index: 2, kind: input, shape index: {}]
  %s3 = inlined_call_operand.vmem [shape: f32[1,128], index: 3, kind: input, shape index: {}]
  %s4 = inlined_call_operand.vmem [shape: f32[1,256], index: 4, kind: input, shape index: {}]
  %s5 = inlined_call_operand.hbm [shape: f32[6,64,128], index: 5, kind: input, shape index: {}]
  %s6 = inlined_call_operand.hbm [shape: f32[5,64,256], index: 6, kind: input, shape index: {}]
  %s7 = inlined_call_operand.hbm [shape: f32[64,256], index: 7, kind: output, shape index: {}]
  %s8 = sld [smem:[#allocation0]]
  $region81: #{tpu_custom_call.1} parent=0
    _
  %s10 = ssub.s32 1, %s8
  %s11 = scalar_select 0, %s10, %s8
  $region1: #{tpu_custom_call.1} parent=0
    #allocation2 [shape = 'u8[65536]{0}', space=vmem, size = 0x10000, scoped, tag = 'input window, operand 0']
    #allocation3 [shape = 's32[2]{0}', space=sflag, size = 0x8, scoped, tag = 'scoped memory for tpu_custom_call.1']
    #allocation4 [shape = 's32[2]{0}', space=sflag, size = 0x8, scoped, tag = 'scoped memory for tpu_custom_call.1']
    #allocation5 [shape = 'u8[65536]{0}', space=vmem, size = 0x10000, scoped, tag = 'input window, operand 1, single buffered']
    #allocation6 [shape = 's32[1]{0}', space=sflag, size = 0x4, scoped, tag = 'scoped memory for tpu_custom_call.1']
    #allocation7 [shape = 'u8[65536]{0}', space=vmem, size = 0x10000, scoped, tag = 'input window, operand 2, single buffered']
    #allocation8 [shape = 'u8[196608]{0}', space=vmem, size = 0x30000, scoped, tag = 'input window, operand 5']
    #allocation9 [shape = 's32[2]{0}', space=sflag, size = 0x8, scoped, tag = 'scoped memory for tpu_custom_call.1']
    #allocation10 [shape = 'u8[327680]{0}', space=vmem, size = 0x50000, scoped, tag = 'input window, operand 6']
    #allocation11 [shape = 'u8[65536]{0}', space=vmem, size = 0x10000, scoped, tag = 'output window, operand 0']
    %12 = vsyncpa [#allocation3], 0
    %s13 = scalar_lea.sflag [#allocation3], 1
    %14 = vsyncpa %s13, 0
    %15 = vsyncpa [#allocation6], 0
    %16 = vsyncpa [#allocation9], 0
    %s17 = scalar_lea.sflag [#allocation9], 1
    %18 = vsyncpa %s17, 0
    %19 = vsyncpa [#allocation4], 0
    %s20 = scalar_lea.sflag [#allocation4], 1
    %21 = vsyncpa %s20, 0
    loop: start=0, step=1, limit=4
    $region2: #{tpu_custom_call.1} parent=1 // loop_pre_header
      _
    $region3: #{tpu_custom_call.1} parent=1 // loop_header
      %s23 = sphi 0, %s27
      %p24 = scmp.ge.s32.totalorder %s23, 4
      %s33 = sphi 0, %s35
      %s36 = sphi 0, %s33
      %s37 = sphi 0, %s36
      %s53 = sphi 0, %s37
      %s57 = sphi 0, %s57
      %s59 = sphi 0, %s57
      %s60 = sphi 0, %s59
      %s74 = sphi 0, %s60
      %s78 = sphi 0, %s78
      %s80 = sphi 0, %s78
      %s81 = sphi 0, %s80
      %s95 = sphi 0, %s81
      %s99 = sphi 0, %s99
      %s101 = sphi 0, %s99
      %s102 = sphi 0, %s101
      %s116 = sphi 0, %s102
      %s120 = sphi 0, %s120
      %s122 = sphi 0, %s120
      %s123 = sphi 0, %s122
      %s137 = sphi 0, %s123
      %s143 = sphi 0, %s145
      %s146 = sphi 0, %s143
      %s147 = sphi 0, %s146
      %s163 = sphi 0, %s147
      %s169 = sphi 0, %s171
      %s172 = sphi 0, %s169
      %s173 = sphi 0, %s172
      %s189 = sphi 0, %s173
      %s195 = sphi 0, %s197
      %s198 = sphi 0, %s195
      %s199 = sphi 0, %s198
      %s215 = sphi 0, %s199
    $region4: #{tpu_custom_call.1} parent=1 // loop_header_branch
      %26 = sbr.rel (%p24) target = $region8
    $region5: #{tpu_custom_call.1} parent=1 // loop_body
      %s28 = ssub.s32 %s23, 1
      %s29 = ssub.s32 %s23, 2
      %s30 = sadd.s32 %s23, 1
      %s31 = ssub.s32 %s23, %s30
      %p32 = scmp.eq.s32.totalorder %s31, 0
      %s34 = sadd.s32 %s33, 1
      %s35 = scalar_select %p32, %s33, %s34
      %p38 = pneg %p32
      %p39 = scmp.eq.s32.totalorder %s23, 1
      %p40 = por %p38, %p39
      %p41 = scmp.ne.s32.totalorder %s33, %s36
      %p42 = scmp.eq.s32.totalorder %s23, 0
      %p43 = por %p41, %p42
      %p44 = scmp.ne.s32.totalorder %s33, %s36
      %p45 = scmp.eq.s32.totalorder %s28, 1
      %p46 = por %p44, %p45
      %p47 = scmp.ne.s32.totalorder %s36, %s37
      %p48 = scmp.eq.s32.totalorder %s28, 0
      %p49 = por %p47, %p48
      %p50 = scmp.ne.s32.totalorder %s36, %s37
      %p51 = scmp.eq.s32.totalorder %s29, 1
      %p52 = por %p50, %p51
      %p54 = scmp.ne.s32.totalorder %s37, %s53
      %p55 = scmp.eq.s32.totalorder %s29, 0
      %p56 = por %p54, %p55
      %s58 = sadd.s32 %s57, 1
      %p61 = scmp.eq.s32.totalorder %s23, 1
      %p62 = scmp.ne.s32.totalorder %s57, %s59
      %p63 = scmp.eq.s32.totalorder %s23, 0
      %p64 = por %p62, %p63
      %p65 = scmp.ne.s32.totalorder %s57, %s59
      %p66 = scmp.eq.s32.totalorder %s28, 1
      %p67 = por %p65, %p66
      %p68 = scmp.ne.s32.totalorder %s59, %s60
      %p69 = scmp.eq.s32.totalorder %s28, 0
      %p70 = por %p68, %p69
      %p71 = scmp.ne.s32.totalorder %s59, %s60
      %p72 = scmp.eq.s32.totalorder %s29, 1
      %p73 = por %p71, %p72
      %p75 = scmp.ne.s32.totalorder %s60, %s74
      %p76 = scmp.eq.s32.totalorder %s29, 0
      %p77 = por %p75, %p76
      %s79 = sadd.s32 %s78, 1
      %p82 = scmp.eq.s32.totalorder %s23, 1
      %p83 = scmp.ne.s32.totalorder %s78, %s80
      %p84 = scmp.eq.s32.totalorder %s23, 0
      %p85 = por %p83, %p84
      %p86 = scmp.ne.s32.totalorder %s78, %s80
      %p87 = scmp.eq.s32.totalorder %s28, 1
      %p88 = por %p86, %p87
      %p89 = scmp.ne.s32.totalorder %s80, %s81
      %p90 = scmp.eq.s32.totalorder %s28, 0
      %p91 = por %p89, %p90
      %p92 = scmp.ne.s32.totalorder %s80, %s81
      %p93 = scmp.eq.s32.totalorder %s29, 1
      %p94 = por %p92, %p93
      %p96 = scmp.ne.s32.totalorder %s81, %s95
      %p97 = scmp.eq.s32.totalorder %s29, 0
      %p98 = por %p96, %p97
      %s100 = sadd.s32 %s99, 1
      %p103 = scmp.eq.s32.totalorder %s23, 1
      %p104 = scmp.ne.s32.totalorder %s99, %s101
      %p105 = scmp.eq.s32.totalorder %s23, 0
      %p106 = por %p104, %p105
      %p107 = scmp.ne.s32.totalorder %s99, %s101
      %p108 = scmp.eq.s32.totalorder %s28, 1
      %p109 = por %p107, %p108
      %p110 = scmp.ne.s32.totalorder %s101, %s102
      %p111 = scmp.eq.s32.totalorder %s28, 0
      %p112 = por %p110, %p111
      %p113 = scmp.ne.s32.totalorder %s101, %s102
      %p114 = scmp.eq.s32.totalorder %s29, 1
      %p115 = por %p113, %p114
      %p117 = scmp.ne.s32.totalorder %s102, %s116
      %p118 = scmp.eq.s32.totalorder %s29, 0
      %p119 = por %p117, %p118
      %s121 = sadd.s32 %s120, 1
      %p124 = scmp.eq.s32.totalorder %s23, 1
      %p125 = scmp.ne.s32.totalorder %s120, %s122
      %p126 = scmp.eq.s32.totalorder %s23, 0
      %p127 = por %p125, %p126
      %p128 = scmp.ne.s32.totalorder %s120, %s122
      %p129 = scmp.eq.s32.totalorder %s28, 1
      %p130 = por %p128, %p129
      %p131 = scmp.ne.s32.totalorder %s122, %s123
      %p132 = scmp.eq.s32.totalorder %s28, 0
      %p133 = por %p131, %p132
      %p134 = scmp.ne.s32.totalorder %s122, %s123
      %p135 = scmp.eq.s32.totalorder %s29, 1
      %p136 = por %p134, %p135
      %p138 = scmp.ne.s32.totalorder %s123, %s137
      %p139 = scmp.eq.s32.totalorder %s29, 0
      %p140 = por %p138, %p139
      %s141 = ssub.s32 %s23, %s30
      %p142 = scmp.eq.s32.totalorder %s141, 0
      %s144 = sadd.s32 %s143, 1
      %s145 = scalar_select %p142, %s143, %s144
      %p148 = pneg %p142
      %p149 = scmp.eq.s32.totalorder %s23, 1
      %p150 = por %p148, %p149
      %p151 = scmp.ne.s32.totalorder %s143, %s146
      %p152 = scmp.eq.s32.totalorder %s23, 0
      %p153 = por %p151, %p152
      %p154 = scmp.ne.s32.totalorder %s143, %s146
      %p155 = scmp.eq.s32.totalorder %s28, 1
      %p156 = por %p154, %p155
      %p157 = scmp.ne.s32.totalorder %s146, %s147
      %p158 = scmp.eq.s32.totalorder %s28, 0
      %p159 = por %p157, %p158
      %p160 = scmp.ne.s32.totalorder %s146, %s147
      %p161 = scmp.eq.s32.totalorder %s29, 1
      %p162 = por %p160, %p161
      %p164 = scmp.ne.s32.totalorder %s147, %s163
      %p165 = scmp.eq.s32.totalorder %s29, 0
      %p166 = por %p164, %p165
      %s167 = ssub.s32 %s23, %s30
      %p168 = scmp.eq.s32.totalorder %s167, 0
      %s170 = sadd.s32 %s169, 1
      %s171 = scalar_select %p168, %s169, %s170
      %p174 = pneg %p168
      %p175 = scmp.eq.s32.totalorder %s23, 1
      %p176 = por %p174, %p175
      %p177 = scmp.ne.s32.totalorder %s169, %s172
      %p178 = scmp.eq.s32.totalorder %s23, 0
      %p179 = por %p177, %p178
      %p180 = scmp.ne.s32.totalorder %s169, %s172
      %p181 = scmp.eq.s32.totalorder %s28, 1
      %p182 = por %p180, %p181
      %p183 = scmp.ne.s32.totalorder %s172, %s173
      %p184 = scmp.eq.s32.totalorder %s28, 0
      %p185 = por %p183, %p184
      %p186 = scmp.ne.s32.totalorder %s172, %s173
      %p187 = scmp.eq.s32.totalorder %s29, 1
      %p188 = por %p186, %p187
      %p190 = scmp.ne.s32.totalorder %s173, %s189
      %p191 = scmp.eq.s32.totalorder %s29, 0
      %p192 = por %p190, %p191
      %s193 = ssub.s32 %s23, %s30
      %p194 = scmp.eq.s32.totalorder %s193, 0
      %s196 = sadd.s32 %s195, 1
      %s197 = scalar_select %p194, %s195, %s196
      %p200 = pneg %p194
      %p201 = scmp.eq.s32.totalorder %s23, 1
      %p202 = por %p200, %p201
      %p203 = scmp.ne.s32.totalorder %s195, %s198
      %p204 = scmp.eq.s32.totalorder %s23, 0
      %p205 = por %p203, %p204
      %p206 = scmp.ne.s32.totalorder %s195, %s198
      %p207 = scmp.eq.s32.totalorder %s28, 1
      %p208 = por %p206, %p207
      %p209 = scmp.ne.s32.totalorder %s198, %s199
      %p210 = scmp.eq.s32.totalorder %s28, 0
      %p211 = por %p209, %p210
      %p212 = scmp.ne.s32.totalorder %s198, %s199
      %p213 = scmp.eq.s32.totalorder %s29, 1
      %p214 = por %p212, %p213
      %p216 = scmp.ne.s32.totalorder %s199, %s215
      %p217 = scmp.eq.s32.totalorder %s29, 0
      %p218 = por %p216, %p217
      %p219 = scmp.le.s32.totalorder 1, %s23
      %p220 = scmp.lt.s32.totalorder %s23, 3
      %p221 = pnand %p219, %p220
      %p222 = pneg %p221
      // Predicated region
      $region9: #{tpu_custom_call.1} parent=5 // pred_check
        _
      $region10: #{tpu_custom_call.1} parent=5 // pred_check_branch
        %224 = sbr.rel (%p221) target = $region12
      $region11: #{tpu_custom_call.1} parent=5 // pred_region
        %s225 = ssub.s32 %s23, 1
        // Predicated region
        $region13: #{tpu_custom_call.1} parent=11 // pred_check
          %p226 = pneg %p70
        $region14: #{tpu_custom_call.1} parent=11 // pred_check_branch
          %228 = sbr.rel (%p226) target = $region16
        $region15: #{tpu_custom_call.1} parent=11 // pred_region
          %s230 = ssub.s32 2048, 2048
          %231 = vsyncadd [#allocation6], %s230
          %s232 = sshll.u32 [#allocation5], 4
          %s233 = int_to_ptr.vmem [resolvable:$true] %s232
          %238 = dma.hbm_to_vmem [thread:$0]  %s1, 2048, %s233, [#allocation6], 128, 128, 8
        $region16: #{tpu_custom_call.1} parent=11 // pred_fallthru
          _
        // Predicated region
        $region17: #{tpu_custom_call.1} parent=11 // pred_check
          %p239 = pneg %p91
        $region18: #{tpu_custom_call.1} parent=11 // pred_check_branch
          %241 = sbr.rel (%p239) target = $region20
        $region19: #{tpu_custom_call.1} parent=11 // pred_region
          %s243 = ssub.s32 2048, 2048
          %244 = vsyncadd [#allocation6], %s243
          %s245 = sshll.u32 [#allocation7], 4
          %s246 = int_to_ptr.vmem [resolvable:$true] %s245
          %251 = dma.hbm_to_vmem [thread:$0]  %s2, 2048, %s246, [#allocation6], 64, 64, 4
        $region20: #{tpu_custom_call.1} parent=11 // pred_fallthru
          _
        // Predicated region
        $region21: #{tpu_custom_call.1} parent=11 // pred_check
          %p252 = pneg %p112
        $region22: #{tpu_custom_call.1} parent=11 // pred_check_branch
          %254 = sbr.rel (%p252) target = $region24
        $region23: #{tpu_custom_call.1} parent=11 // pred_region
          _
        $region24: #{tpu_custom_call.1} parent=11 // pred_fallthru
          _
        // Predicated region
        $region25: #{tpu_custom_call.1} parent=11 // pred_check
          %p255 = pneg %p133
        $region26: #{tpu_custom_call.1} parent=11 // pred_check_branch
          %257 = sbr.rel (%p255) target = $region28
        $region27: #{tpu_custom_call.1} parent=11 // pred_region
          _
        $region28: #{tpu_custom_call.1} parent=11 // pred_fallthru
          _
      $region12: #{tpu_custom_call.1} parent=5 // pred_fallthru
        _
      %p258 = scmp.lt.s32.totalorder %s23, 2
      // Predicated region
      $region29: #{tpu_custom_call.1} parent=5 // pred_check
        %p259 = pneg %p258
      $region30: #{tpu_custom_call.1} parent=5 // pred_check_branch
        %261 = sbr.rel (%p259) target = $region32
      $region31: #{tpu_custom_call.1} parent=5 // pred_region
        // Predicated region
        $region33: #{tpu_custom_call.1} parent=31 // pred_check
          %p262 = pneg %p43
        $region34: #{tpu_custom_call.1} parent=31 // pred_check_branch
          %264 = sbr.rel (%p262) target = $region36
        $region35: #{tpu_custom_call.1} parent=31 // pred_region
          %s265 = sand.u32 %s33, 1
          %s266 = scalar_lea.sflag [#allocation3], %s265
          %s267 = sand.u32 %s33, 1
          %s268 = smul.addr %s267, 64
          %s269 = scalar_lea.vmem [#allocation2], %s268
          %s270 = smul.u32 4, %s23
          %s272 = ssub.s32 1024, 1024
          %273 = vsyncadd %s266, %s272
          %s274 = smul.addr %s270, 2
          %s275 = smul.addr %s274, 128
          %s276 = scalar_lea.hbm %s0, %s275
          %s277 = sshll.u32 %s269, 4
          %s278 = int_to_ptr.vmem [resolvable:$true] %s277
          %283 = dma.hbm_to_vmem [thread:$0]  %s276, 1024, %s278, %s266, 256, 256, 16
        $region36: #{tpu_custom_call.1} parent=31 // pred_fallthru
          _
        // Predicated region
        $region37: #{tpu_custom_call.1} parent=31 // pred_check
          %p284 = pneg %p153
        $region38: #{tpu_custom_call.1} parent=31 // pred_check_branch
          %286 = sbr.rel (%p284) target = $region40
        $region39: #{tpu_custom_call.1} parent=31 // pred_region
          #allocation13 [shape = 'u32[6]{0}', space=smem, size = 0x18, scoped, tag = 'DMA stride descriptor']
          %s287 = sand.u32 %s23, 1
          %s288 = scalar_lea.sflag [#allocation9], %s287
          %s289 = sand.u32 %s143, 1
          %s290 = smul.addr %s289, 192
          %s291 = scalar_lea.vmem [#allocation8], %s290
          %s292 = smul.u32 4, %s23
          %s294 = ssub.s32 3072, 3072
          %295 = vsyncadd %s288, %s294
          %s296 = smul.addr %s292, 128
          %s297 = scalar_lea.hbm %s5, %s296
          %s299 = sshll.u32 1, 14
          %s300 = sxor.u32 4294967295, %s299
          %s302 = sld [smem:[#allocation0]]
          %s303 = sadd.s32 2, %s302
          %s305 = sshll.u32 7, 26
          %s306 = sxor.u32 4294967295, %s305
          %s307 = sand.u32 0, %s306
          %s308 = sshll.u32 %s303, 26
          %s309 = sor.u32 %s307, %s308
          %s310 = sshll.u32 %s291, 4
          %s311 = int_to_ptr.vmem [resolvable:$true] %s310
          %317 = sst [smem:[#allocation13]] 1024
          %s318 = scalar_lea.smem [#allocation13], 1
          %319 = sst [smem:[%s318]] 512
          %s320 = scalar_lea.smem [#allocation13], 2
          %321 = sst [smem:[%s320]] 4
          %s322 = scalar_lea.smem [#allocation13], 3
          %323 = sst [smem:[%s322]] 128
          %s324 = scalar_lea.smem [#allocation13], 4
          %325 = sst [smem:[%s324]] 128
          %s326 = scalar_lea.smem [#allocation13], 5
          %327 = sst [smem:[%s326]] 8
          %329 = dma.general %s297, 3072, %s311, %s288, [#allocation12], [#allocation13], %s309, 0
        $region40: #{tpu_custom_call.1} parent=31 // pred_fallthru
          _
        // Predicated region
        $region41: #{tpu_custom_call.1} parent=31 // pred_check
          %p330 = pneg %p179
        $region42: #{tpu_custom_call.1} parent=31 // pred_check_branch
          %332 = sbr.rel (%p330) target = $region44
        $region43: #{tpu_custom_call.1} parent=31 // pred_region
          #allocation15 [shape = 'u32[6]{0}', space=smem, size = 0x18, scoped, tag = 'DMA stride descriptor']
          %s333 = sand.u32 %s23, 1
          %s334 = scalar_lea.sflag [#allocation9], %s333
          %s335 = sand.u32 %s169, 1
          %s336 = smul.addr %s335, 320
          %s337 = scalar_lea.vmem [#allocation10], %s336
          %s338 = smul.u32 4, %s23
          %s340 = ssub.s32 5120, 5120
          %341 = vsyncadd %s334, %s340
          %s342 = smul.addr %s338, 2
          %s343 = smul.addr %s342, 128
          %s344 = scalar_lea.hbm %s6, %s343
          %s346 = sshll.u32 1, 14
          %s347 = sxor.u32 4294967295, %s346
          %s349 = sld [smem:[#allocation0]]
          %s350 = sadd.s32 2, %s349
          %s352 = sshll.u32 7, 26
          %s353 = sxor.u32 4294967295, %s352
          %s354 = sand.u32 0, %s353
          %s355 = sshll.u32 %s350, 26
          %s356 = sor.u32 %s354, %s355
          %s357 = sshll.u32 %s337, 4
          %s358 = int_to_ptr.vmem [resolvable:$true] %s357
          %364 = sst [smem:[#allocation15]] 2048
          %s365 = scalar_lea.smem [#allocation15], 1
          %366 = sst [smem:[%s365]] 1024
          %s367 = scalar_lea.smem [#allocation15], 2
          %368 = sst [smem:[%s367]] 4
          %s369 = scalar_lea.smem [#allocation15], 3
          %370 = sst [smem:[%s369]] 256
          %s371 = scalar_lea.smem [#allocation15], 4
          %372 = sst [smem:[%s371]] 256
          %s373 = scalar_lea.smem [#allocation15], 5
          %374 = sst [smem:[%s373]] 16
          %376 = dma.general %s344, 5120, %s358, %s334, [#allocation14], [#allocation15], %s356, 0
        $region44: #{tpu_custom_call.1} parent=31 // pred_fallthru
          _
      $region32: #{tpu_custom_call.1} parent=5 // pred_fallthru
        _
      %p377 = scmp.le.s32.totalorder 1, %s23
      %p378 = scmp.lt.s32.totalorder %s23, 3
      %p379 = pnand %p377, %p378
      %p380 = pneg %p379
      // Predicated region
      $region45: #{tpu_custom_call.1} parent=5 // pred_check
        _
      $region46: #{tpu_custom_call.1} parent=5 // pred_check_branch
        %382 = sbr.rel (%p379) target = $region48
      $region47: #{tpu_custom_call.1} parent=5 // pred_region
        %s383 = ssub.s32 %s23, 1
        %s384 = sand.u32 %s36, 1
        %s385 = scalar_lea.sflag [#allocation3], %s384
        %s386 = sand.u32 %s36, 1
        %s387 = smul.addr %s386, 64
        %s388 = scalar_lea.vmem [#allocation2], %s387
        // Predicated region
        $region49: #{tpu_custom_call.1} parent=47 // pred_check
          %p389 = pneg %p49
        $region50: #{tpu_custom_call.1} parent=47 // pred_check_branch
          %391 = sbr.rel (%p389) target = $region52
        $region51: #{tpu_custom_call.1} parent=47 // pred_region
          %392 = dma.done %s385, 1024
        $region52: #{tpu_custom_call.1} parent=47 // pred_fallthru
          _
        // Predicated region
        $region53: #{tpu_custom_call.1} parent=47 // pred_check
          %p393 = pneg %p70
        $region54: #{tpu_custom_call.1} parent=47 // pred_check_branch
          %395 = sbr.rel (%p393) target = $region56
        $region55: #{tpu_custom_call.1} parent=47 // pred_region
          %396 = dma.done [#allocation6], 2048
        $region56: #{tpu_custom_call.1} parent=47 // pred_fallthru
          _
        // Predicated region
        $region57: #{tpu_custom_call.1} parent=47 // pred_check
          %p397 = pneg %p91
        $region58: #{tpu_custom_call.1} parent=47 // pred_check_branch
          %399 = sbr.rel (%p397) target = $region60
        $region59: #{tpu_custom_call.1} parent=47 // pred_region
          %400 = dma.done [#allocation6], 2048
        $region60: #{tpu_custom_call.1} parent=47 // pred_fallthru
          _
        %s401 = sand.u32 %s28, 1
        %s402 = scalar_lea.sflag [#allocation9], %s401
        %s403 = sand.u32 %s146, 1
        %s404 = smul.addr %s403, 192
        %s405 = scalar_lea.vmem [#allocation8], %s404
        // Predicated region
        $region61: #{tpu_custom_call.1} parent=47 // pred_check
          %p406 = pneg %p159
        $region62: #{tpu_custom_call.1} parent=47 // pred_check_branch
          %408 = sbr.rel (%p406) target = $region64
        $region63: #{tpu_custom_call.1} parent=47 // pred_region
          %409 = dma.done %s402, 3072
        $region64: #{tpu_custom_call.1} parent=47 // pred_fallthru
          _
        %s410 = sand.u32 %s28, 1
        %s411 = scalar_lea.sflag [#allocation9], %s410
        %s412 = sand.u32 %s172, 1
        %s413 = smul.addr %s412, 320
        %s414 = scalar_lea.vmem [#allocation10], %s413
        // Predicated region
        $region65: #{tpu_custom_call.1} parent=47 // pred_check
          %p415 = pneg %p185
        $region66: #{tpu_custom_call.1} parent=47 // pred_check_branch
          %417 = sbr.rel (%p415) target = $region68
        $region67: #{tpu_custom_call.1} parent=47 // pred_region
          %418 = dma.done %s411, 5120
        $region68: #{tpu_custom_call.1} parent=47 // pred_fallthru
          _
        %s419 = sand.u32 %s36, 1
        %s420 = scalar_lea.sflag [#allocation3], %s419
        %s421 = sand.u32 %s36, 1
        %s422 = smul.addr %s421, 64
        %s423 = scalar_lea.vmem [#allocation2], %s422
        %p424 = pneg %p49
        %p425 = pneg %p46
        %p426 = pneg %p70
        %p427 = pneg %p67
        %p428 = pneg %p91
        %p429 = pneg %p88
        %p430 = pneg %p112
        %p431 = pneg %p109
        %p432 = pneg %p133
        %p433 = pneg %p130
        %s434 = sand.u32 %s28, 1
        %s435 = scalar_lea.sflag [#allocation9], %s434
        %s436 = sand.u32 %s146, 1
        %s437 = smul.addr %s436, 192
        %s438 = scalar_lea.vmem [#allocation8], %s437
        %p439 = pneg %p159
        %p440 = pneg %p156
        %s441 = sand.u32 %s28, 1
        %s442 = scalar_lea.sflag [#allocation9], %s441
        %s443 = sand.u32 %s172, 1
        %s444 = smul.addr %s443, 320
        %s445 = scalar_lea.vmem [#allocation10], %s444
        %p446 = pneg %p185
        %p447 = pneg %p182
        %p448 = pneg %p211
        %p449 = pneg %p208
        %s450 = sand.u32 %s198, 1
        %s451 = scalar_lea.sflag [#allocation4], %s450
        %s452 = sand.u32 %s198, 1
        %s453 = smul.addr %s452, 64
        %s454 = scalar_lea.vmem [#allocation11], %s453
        %s455 = smul.u32 4, %s28
        %s456 = smul.u32 4, %s28
        %s457 = smul.u32 4, %s28
        %s458 = smul.u32 4, %s28
        %v460 = vld [vmem:[#allocation5] sm:$0xff]
        %v461 = vld [vmem:[#allocation5 + $0x8] sm:$0xff]
        %v462 = vld [vmem:[#allocation5 + $0x10] sm:$0xff]
        %v463 = vld [vmem:[#allocation5 + $0x18] sm:$0xff]
        %v464 = vld [vmem:[#allocation5 + $0x20] sm:$0xff]
        %v465 = vld [vmem:[#allocation5 + $0x28] sm:$0xff]
        %v466 = vld [vmem:[#allocation5 + $0x30] sm:$0xff]
        %v467 = vld [vmem:[#allocation5 + $0x38] sm:$0xff]
        %v468 = vld [vmem:[#allocation5 + $0x40] sm:$0xff]
        %v469 = vld [vmem:[#allocation5 + $0x48] sm:$0xff]
        %v470 = vld [vmem:[#allocation5 + $0x50] sm:$0xff]
        %v471 = vld [vmem:[#allocation5 + $0x58] sm:$0xff]
        %v472 = vld [vmem:[#allocation5 + $0x60] sm:$0xff]
        %v473 = vld [vmem:[#allocation5 + $0x68] sm:$0xff]
        %v474 = vld [vmem:[#allocation5 + $0x70] sm:$0xff]
        %v475 = vld [vmem:[#allocation5 + $0x78] sm:$0xff]
        %v476 = vld [vmem:[#allocation7] sm:$0xf]
        %v477 = vld [vmem:[#allocation7 + $0x4] sm:$0xf]
        %v478 = vld [vmem:[#allocation7 + $0x8] sm:$0xf]
        %v479 = vld [vmem:[#allocation7 + $0xc] sm:$0xf]
        %v480 = vld [vmem:[#allocation7 + $0x10] sm:$0xf]
        %v481 = vld [vmem:[#allocation7 + $0x14] sm:$0xf]
        %v482 = vld [vmem:[#allocation7 + $0x18] sm:$0xf]
        %v483 = vld [vmem:[#allocation7 + $0x1c] sm:$0xf]
        %v484 = vld [vmem:[#allocation7 + $0x20] sm:$0xf]
        %v485 = vld [vmem:[#allocation7 + $0x24] sm:$0xf]
        %v486 = vld [vmem:[#allocation7 + $0x28] sm:$0xf]
        %v487 = vld [vmem:[#allocation7 + $0x2c] sm:$0xf]
        %v488 = vld [vmem:[#allocation7 + $0x30] sm:$0xf]
        %v489 = vld [vmem:[#allocation7 + $0x34] sm:$0xf]
        %v490 = vld [vmem:[#allocation7 + $0x38] sm:$0xf]
        %v491 = vld [vmem:[#allocation7 + $0x3c] sm:$0xf]
        %v492 = vld [vmem:[#allocation7 + $0x40] sm:$0xf]
        %v493 = vld [vmem:[#allocation7 + $0x44] sm:$0xf]
        %v494 = vld [vmem:[#allocation7 + $0x48] sm:$0xf]
        %v495 = vld [vmem:[#allocation7 + $0x4c] sm:$0xf]
        %v496 = vld [vmem:[#allocation7 + $0x50] sm:$0xf]
        %v497 = vld [vmem:[#allocation7 + $0x54] sm:$0xf]
        %v498 = vld [vmem:[#allocation7 + $0x58] sm:$0xf]
        %v499 = vld [vmem:[#allocation7 + $0x5c] sm:$0xf]
        %v500 = vld [vmem:[#allocation7 + $0x60] sm:$0xf]
        %v501 = vld [vmem:[#allocation7 + $0x64] sm:$0xf]
        %v502 = vld [vmem:[#allocation7 + $0x68] sm:$0xf]
        %v503 = vld [vmem:[#allocation7 + $0x6c] sm:$0xf]
        %v504 = vld [vmem:[#allocation7 + $0x70] sm:$0xf]
        %v505 = vld [vmem:[#allocation7 + $0x74] sm:$0xf]
        %v506 = vld [vmem:[#allocation7 + $0x78] sm:$0xf]
        %v507 = vld [vmem:[#allocation7 + $0x7c] sm:$0xf]
        %v508 = vld [vmem:[%s3] sm:$0x1]
        %v510 = vlaneseq
        %v511 = vshrl.u32 %v510, 7
        %v512 = vsub.s32 0, %v511
        %v513 = vrot.slane %v508, %v512
        %v515 = vld [vmem:[%s4] sm:$0x3]
        %v517 = vlaneseq
        %v518 = vshrl.u32 %v517, 7
        %v519 = vsub.s32 0, %v518
        %v520 = vrot.slane %v515, %v519
        %v521 = vlaneseq
        %v522 = vshrl.u32 %v521, 7
        %v523 = vsub.s32 1, %v522
        %v524 = vrot.slane %v515, %v523
        %v527 = vld [vmem:[%s388] sm:$0xff]
        %v528 = vld [vmem:[%s388 + $0x8] sm:$0xff]
        %v529 = vld [vmem:[%s388 + $0x10] sm:$0xff]
        %v530 = vld [vmem:[%s388 + $0x18] sm:$0xff]
        %v531 = vld [vmem:[%s388 + $0x20] sm:$0xff]
        %v532 = vld [vmem:[%s388 + $0x28] sm:$0xff]
        %v533 = vld [vmem:[%s388 + $0x30] sm:$0xff]
        %v534 = vld [vmem:[%s388 + $0x38] sm:$0xff]
        %v535 = vpack.c.bf16 %v529, %v527
        %v536 = vpack.c.bf16 %v530, %v528
        %v537 = vpack.c.bf16 %v533, %v531
        %v538 = vpack.c.bf16 %v534, %v532
        %v571 = vunpack.c.l.b16 %v476
        %v572 = vunpack.c.l.b16 %v477
        %v573 = vunpack.c.l.b16 %v478
        %v574 = vunpack.c.l.b16 %v479
        %v575 = vunpack.c.l.b16 %v480
        %v576 = vunpack.c.l.b16 %v481
        %v577 = vunpack.c.l.b16 %v482
        %v578 = vunpack.c.l.b16 %v483
        %v579 = vunpack.c.l.b16 %v484
        %v580 = vunpack.c.l.b16 %v485
        %v581 = vunpack.c.l.b16 %v486
        %v582 = vunpack.c.l.b16 %v487
        %v583 = vunpack.c.l.b16 %v488
        %v584 = vunpack.c.l.b16 %v489
        %v585 = vunpack.c.l.b16 %v490
        %v586 = vunpack.c.l.b16 %v491
        %v587 = vunpack.c.l.b16 %v492
        %v588 = vunpack.c.l.b16 %v493
        %v589 = vunpack.c.l.b16 %v494
        %v590 = vunpack.c.l.b16 %v495
        %v591 = vunpack.c.l.b16 %v496
        %v592 = vunpack.c.l.b16 %v497
        %v593 = vunpack.c.l.b16 %v498
        %v594 = vunpack.c.l.b16 %v499
        %v595 = vunpack.c.l.b16 %v500
        %v596 = vunpack.c.l.b16 %v501
        %v597 = vunpack.c.l.b16 %v502
        %v598 = vunpack.c.l.b16 %v503
        %v599 = vunpack.c.l.b16 %v504
        %v600 = vunpack.c.l.b16 %v505
        %v601 = vunpack.c.l.b16 %v506
        %v602 = vunpack.c.l.b16 %v507
        %v603 = vpack.c.b16 %v572, %v571
        %v604 = vpack.c.b16 %v574, %v573
        %v605 = vpack.c.b16 %v576, %v575
        %v606 = vpack.c.b16 %v578, %v577
        %v607 = vpack.c.b16 %v580, %v579
        %v608 = vpack.c.b16 %v582, %v581
        %v609 = vpack.c.b16 %v584, %v583
        %v610 = vpack.c.b16 %v586, %v585
        %v611 = vpack.c.b16 %v588, %v587
        %v612 = vpack.c.b16 %v590, %v589
        %v613 = vpack.c.b16 %v592, %v591
        %v614 = vpack.c.b16 %v594, %v593
        %v615 = vpack.c.b16 %v596, %v595
        %v616 = vpack.c.b16 %v598, %v597
        %v617 = vpack.c.b16 %v600, %v599
        %v618 = vpack.c.b16 %v602, %v601
        %635 = vmatprep.subr.bf16.mxu0 0
        %636 = vmatpush1.bf16.msra.mxu0 %v603
        %637 = vmatprep.subr.bf16.mxu0 0
        %638 = vmatpush1.bf16.msra.mxu0 %v604
        %639 = vmatprep.subr.bf16.mxu0 0
        %640 = vmatpush1.bf16.msra.mxu0 %v605
        %641 = vmatprep.subr.bf16.mxu0 0
        %642 = vmatpush1.bf16.msra.mxu0 %v606
        %643 = vmatprep.subr.bf16.mxu0 0
        %644 = vmatpush1.bf16.msra.mxu0 %v607
        %645 = vmatprep.subr.bf16.mxu0 0
        %646 = vmatpush1.bf16.msra.mxu0 %v608
        %647 = vmatprep.subr.bf16.mxu0 0
        %648 = vmatpush1.bf16.msra.mxu0 %v609
        %649 = vmatprep.subr.bf16.mxu0 0
        %650 = vmatpush1.bf16.msra.mxu0 %v610
        %651 = vmatprep.subr.bf16.mxu0 0
        %652 = vmatpush1.bf16.msra.mxu0 %v611
        %653 = vmatprep.subr.bf16.mxu0 0
        %654 = vmatpush1.bf16.msra.mxu0 %v612
        %655 = vmatprep.subr.bf16.mxu0 0
        %656 = vmatpush1.bf16.msra.mxu0 %v613
        %657 = vmatprep.subr.bf16.mxu0 0
        %658 = vmatpush1.bf16.msra.mxu0 %v614
        %659 = vmatprep.subr.bf16.mxu0 0
        %660 = vmatpush1.bf16.msra.mxu0 %v615
        %661 = vmatprep.subr.bf16.mxu0 0
        %662 = vmatpush1.bf16.msra.mxu0 %v616
        %663 = vmatprep.subr.bf16.mxu0 0
        %664 = vmatpush1.bf16.msra.mxu0 %v617
        %665 = vmatprep.subr.bf16.mxu0 0
        %666 = vmatpush1.bf16.msra.mxu0 %v618
        %667 = vmatprep.mubr.bf16.mxu0 %v536
        %668 = vmatmul.mubr.bf16.gmra.mrb[0].mxu0 %v535
        %v669 = vpop.f32.mrb[0].mxu0
        %v670 = vadd.f32 %v513, %v669
        %v671 = vpop.f32.mrb[0].mxu0
        %v672 = vpop.f32.mrb[0].mxu0
        %v673 = vadd.f32 %v513, %v672
        %v674 = vpop.f32.mrb[0].mxu0
        %675 = vmatprep.mubr.bf16.mxu0 %v538
        %676 = vmatmul.mubr.bf16.gmra.mrb[0].mxu0 %v537
        %v677 = vpop.f32.mrb[0].mxu0
        %v678 = vadd.f32 %v513, %v677
        %v679 = vpop.f32.mrb[0].mxu0
        %v680 = vpop.f32.mrb[0].mxu0
        %v681 = vadd.f32 %v513, %v680
        %v682 = vpop.f32.mrb[0].mxu0
        %683 = vdwg.mxu0
        %v684 = vxor.u32 %v670, 2147483648
        %v685 = vxor.u32 %v673, 2147483648
        %v686 = vxor.u32 %v678, 2147483648
        %v687 = vxor.u32 %v681, 2147483648
        %v688 = vmul.f32 %v684, 1.442695
        %v689 = vpow.pop %v688
        %v690 = vmul.f32 %v685, 1.442695
        %v691 = vpow.pop %v690
        %v692 = vmul.f32 %v686, 1.442695
        %v693 = vpow.pop %v692
        %v694 = vmul.f32 %v687, 1.442695
        %v695 = vpow.pop %v694
        %v696 = vadd.f32 %v689, 1.0
        %v697 = vadd.f32 %v691, 1.0
        %v698 = vadd.f32 %v693, 1.0
        %v699 = vadd.f32 %v695, 1.0
        %v700 = vrcp.pop %v696
        %v701 = vmul.f32 1.0, %v700
        %v702 = vrcp.pop %v697
        %v703 = vmul.f32 1.0, %v702
        %v704 = vrcp.pop %v698
        %v705 = vmul.f32 1.0, %v704
        %v706 = vrcp.pop %v699
        %v707 = vmul.f32 1.0, %v706
        %v708 = vld [vmem:[%s405] sm:$0xff]
        %v709 = vld [vmem:[%s405 + $0x8] sm:$0xff]
        %v710 = vld [vmem:[%s405 + $0x10] sm:$0xff]
        %v711 = vld [vmem:[%s405 + $0x18] sm:$0xff]
        %vm712 = vcmp.gt.f32.partialorder %v701, %v708
        %vm713 = vcmp.gt.f32.partialorder %v703, %v709
        %vm714 = vcmp.gt.f32.partialorder %v705, %v710
        %vm715 = vcmp.gt.f32.partialorder %v707, %v711
        %v716 = vsel %vm712, 1.0, 0.0
        %v717 = vsel %vm713, 1.0, 0.0
        %v718 = vsel %vm714, 1.0, 0.0
        %v719 = vsel %vm715, 1.0, 0.0
        %v720 = vpack.c.bf16 %v717, %v716
        %v721 = vpack.c.bf16 %v719, %v718
        %v738 = vunpack.c.l.b16 %v460
        %v739 = vunpack.c.h.b16 %v460
        %v740 = vunpack.c.l.b16 %v461
        %v741 = vunpack.c.h.b16 %v461
        %v742 = vunpack.c.l.b16 %v462
        %v743 = vunpack.c.h.b16 %v462
        %v744 = vunpack.c.l.b16 %v463
        %v745 = vunpack.c.h.b16 %v463
        %v746 = vunpack.c.l.b16 %v464
        %v747 = vunpack.c.h.b16 %v464
        %v748 = vunpack.c.l.b16 %v465
        %v749 = vunpack.c.h.b16 %v465
        %v750 = vunpack.c.l.b16 %v466
        %v751 = vunpack.c.h.b16 %v466
        %v752 = vunpack.c.l.b16 %v467
        %v753 = vunpack.c.h.b16 %v467
        %v754 = vunpack.c.l.b16 %v468
        %v755 = vunpack.c.h.b16 %v468
        %v756 = vunpack.c.l.b16 %v469
        %v757 = vunpack.c.h.b16 %v469
        %v758 = vunpack.c.l.b16 %v470
        %v759 = vunpack.c.h.b16 %v470
        %v760 = vunpack.c.l.b16 %v471
        %v761 = vunpack.c.h.b16 %v471
        %v762 = vunpack.c.l.b16 %v472
        %v763 = vunpack.c.h.b16 %v472
        %v764 = vunpack.c.l.b16 %v473
        %v765 = vunpack.c.h.b16 %v473
        %v766 = vunpack.c.l.b16 %v474
        %v767 = vunpack.c.h.b16 %v474
        %v768 = vunpack.c.l.b16 %v475
        %v769 = vunpack.c.h.b16 %v475
        %v770 = vpack.c.b16 %v740, %v738
        %v771 = vpack.c.b16 %v741, %v739
        %v772 = vpack.c.b16 %v744, %v742
        %v773 = vpack.c.b16 %v745, %v743
        %v774 = vpack.c.b16 %v748, %v746
        %v775 = vpack.c.b16 %v749, %v747
        %v776 = vpack.c.b16 %v752, %v750
        %v777 = vpack.c.b16 %v753, %v751
        %v778 = vpack.c.b16 %v756, %v754
        %v779 = vpack.c.b16 %v757, %v755
        %v780 = vpack.c.b16 %v760, %v758
        %v781 = vpack.c.b16 %v761, %v759
        %v782 = vpack.c.b16 %v764, %v762
        %v783 = vpack.c.b16 %v765, %v763
        %v784 = vpack.c.b16 %v768, %v766
        %v785 = vpack.c.b16 %v769, %v767
        %802 = vmatprep.subr.bf16.mxu0 %v771
        %803 = vmatpush1.bf16.msra.mxu0 %v770
        %804 = vmatprep.subr.bf16.mxu0 %v773
        %805 = vmatpush1.bf16.msra.mxu0 %v772
        %806 = vmatprep.subr.bf16.mxu0 %v775
        %807 = vmatpush1.bf16.msra.mxu0 %v774
        %808 = vmatprep.subr.bf16.mxu0 %v777
        %809 = vmatpush1.bf16.msra.mxu0 %v776
        %810 = vmatprep.subr.bf16.mxu0 %v779
        %811 = vmatpush1.bf16.msra.mxu0 %v778
        %812 = vmatprep.subr.bf16.mxu0 %v781
        %813 = vmatpush1.bf16.msra.mxu0 %v780
        %814 = vmatprep.subr.bf16.mxu0 %v783
        %815 = vmatpush1.bf16.msra.mxu0 %v782
        %816 = vmatprep.subr.bf16.mxu0 %v785
        %817 = vmatpush1.bf16.msra.mxu0 %v784
        %818 = vmatprep.subr.bf16.mxu0 0
        %819 = vmatpush1.bf16.msra.mxu0 0
        %820 = vmatprep.subr.bf16.mxu0 0
        %821 = vmatpush1.bf16.msra.mxu0 0
        %822 = vmatprep.subr.bf16.mxu0 0
        %823 = vmatpush1.bf16.msra.mxu0 0
        %824 = vmatprep.subr.bf16.mxu0 0
        %825 = vmatpush1.bf16.msra.mxu0 0
        %826 = vmatprep.subr.bf16.mxu0 0
        %827 = vmatpush1.bf16.msra.mxu0 0
        %828 = vmatprep.subr.bf16.mxu0 0
        %829 = vmatpush1.bf16.msra.mxu0 0
        %830 = vmatprep.subr.bf16.mxu0 0
        %831 = vmatpush1.bf16.msra.mxu0 0
        %832 = vmatprep.subr.bf16.mxu0 0
        %833 = vmatpush1.bf16.msra.mxu0 0
        %834 = vmatprep.mubr.bf16.mxu0 0
        %835 = vmatmul.mubr.bf16.gmra.mrb[0].mxu0 %v720
        %v836 = vpop.f32.mrb[0].mxu0
        %v837 = vadd.f32 %v520, %v836
        %v838 = vpop.f32.mrb[0].mxu0
        %v839 = vadd.f32 %v524, %v838
        %v840 = vpop.f32.mrb[0].mxu0
        %v841 = vadd.f32 %v520, %v840
        %v842 = vpop.f32.mrb[0].mxu0
        %v843 = vadd.f32 %v524, %v842
        %844 = vmatprep.mubr.bf16.mxu0 0
        %845 = vmatmul.mubr.bf16.gmra.mrb[0].mxu0 %v721
        %v846 = vpop.f32.mrb[0].mxu0
        %v847 = vadd.f32 %v520, %v846
        %v848 = vpop.f32.mrb[0].mxu0
        %v849 = vadd.f32 %v524, %v848
        %v850 = vpop.f32.mrb[0].mxu0
        %v851 = vadd.f32 %v520, %v850
        %v852 = vpop.f32.mrb[0].mxu0
        %v853 = vadd.f32 %v524, %v852
        %854 = vdwg.mxu0
        %v855 = vxor.u32 %v837, 2147483648
        %v856 = vxor.u32 %v839, 2147483648
        %v857 = vxor.u32 %v841, 2147483648
        %v858 = vxor.u32 %v843, 2147483648
        %v859 = vxor.u32 %v847, 2147483648
        %v860 = vxor.u32 %v849, 2147483648
        %v861 = vxor.u32 %v851, 2147483648
        %v862 = vxor.u32 %v853, 2147483648
        %v863 = vmul.f32 %v855, 1.442695
        %v864 = vpow.pop %v863
        %v865 = vmul.f32 %v856, 1.442695
        %v866 = vpow.pop %v865
        %v867 = vmul.f32 %v857, 1.442695
        %v868 = vpow.pop %v867
        %v869 = vmul.f32 %v858, 1.442695
        %v870 = vpow.pop %v869
        %v871 = vmul.f32 %v859, 1.442695
        %v872 = vpow.pop %v871
        %v873 = vmul.f32 %v860, 1.442695
        %v874 = vpow.pop %v873
        %v875 = vmul.f32 %v861, 1.442695
        %v876 = vpow.pop %v875
        %v877 = vmul.f32 %v862, 1.442695
        %v878 = vpow.pop %v877
        %v879 = vadd.f32 %v864, 1.0
        %v880 = vadd.f32 %v866, 1.0
        %v881 = vadd.f32 %v868, 1.0
        %v882 = vadd.f32 %v870, 1.0
        %v883 = vadd.f32 %v872, 1.0
        %v884 = vadd.f32 %v874, 1.0
        %v885 = vadd.f32 %v876, 1.0
        %v886 = vadd.f32 %v878, 1.0
        %v887 = vrcp.pop %v879
        %v888 = vmul.f32 1.0, %v887
        %v889 = vrcp.pop %v880
        %v890 = vmul.f32 1.0, %v889
        %v891 = vrcp.pop %v881
        %v892 = vmul.f32 1.0, %v891
        %v893 = vrcp.pop %v882
        %v894 = vmul.f32 1.0, %v893
        %v895 = vrcp.pop %v883
        %v896 = vmul.f32 1.0, %v895
        %v897 = vrcp.pop %v884
        %v898 = vmul.f32 1.0, %v897
        %v899 = vrcp.pop %v885
        %v900 = vmul.f32 1.0, %v899
        %v901 = vrcp.pop %v886
        %v902 = vmul.f32 1.0, %v901
        %v903 = vld [vmem:[%s414] sm:$0xff]
        %v904 = vld [vmem:[%s414 + $0x8] sm:$0xff]
        %v905 = vld [vmem:[%s414 + $0x10] sm:$0xff]
        %v906 = vld [vmem:[%s414 + $0x18] sm:$0xff]
        %v907 = vld [vmem:[%s414 + $0x20] sm:$0xff]
        %v908 = vld [vmem:[%s414 + $0x28] sm:$0xff]
        %v909 = vld [vmem:[%s414 + $0x30] sm:$0xff]
        %v910 = vld [vmem:[%s414 + $0x38] sm:$0xff]
        %vm911 = vcmp.gt.f32.partialorder %v888, %v903
        %vm912 = vcmp.gt.f32.partialorder %v890, %v904
        %vm913 = vcmp.gt.f32.partialorder %v892, %v905
        %vm914 = vcmp.gt.f32.partialorder %v894, %v906
        %vm915 = vcmp.gt.f32.partialorder %v896, %v907
        %vm916 = vcmp.gt.f32.partialorder %v898, %v908
        %vm917 = vcmp.gt.f32.partialorder %v900, %v909
        %vm918 = vcmp.gt.f32.partialorder %v902, %v910
        %v919 = vsel %vm911, 1.0, 0.0
        %v920 = vsel %vm912, 1.0, 0.0
        %v921 = vsel %vm913, 1.0, 0.0
        %v922 = vsel %vm914, 1.0, 0.0
        %v923 = vsel %vm915, 1.0, 0.0
        %v924 = vsel %vm916, 1.0, 0.0
        %v925 = vsel %vm917, 1.0, 0.0
        %v926 = vsel %vm918, 1.0, 0.0
        %v927 = vpack.c.bf16 %v921, %v919
        %v928 = vpack.c.bf16 %v922, %v920
        %v929 = vpack.c.bf16 %v925, %v923
        %v930 = vpack.c.bf16 %v926, %v924
        %931 = vmatprep.subr.bf16.mxu0 0
        %932 = vmatpush1.bf16.msra.mxu0 %v603
        %933 = vmatprep.subr.bf16.mxu0 0
        %934 = vmatpush1.bf16.msra.mxu0 %v604
        %935 = vmatprep.subr.bf16.mxu0 0
        %936 = vmatpush1.bf16.msra.mxu0 %v605
        %937 = vmatprep.subr.bf16.mxu0 0
        %938 = vmatpush1.bf16.msra.mxu0 %v606
        %939 = vmatprep.subr.bf16.mxu0 0
        %940 = vmatpush1.bf16.msra.mxu0 %v607
        %941 = vmatprep.subr.bf16.mxu0 0
        %942 = vmatpush1.bf16.msra.mxu0 %v608
        %943 = vmatprep.subr.bf16.mxu0 0
        %944 = vmatpush1.bf16.msra.mxu0 %v609
        %945 = vmatprep.subr.bf16.mxu0 0
        %946 = vmatpush1.bf16.msra.mxu0 %v610
        %947 = vmatprep.subr.bf16.mxu0 0
        %948 = vmatpush1.bf16.msra.mxu0 %v611
        %949 = vmatprep.subr.bf16.mxu0 0
        %950 = vmatpush1.bf16.msra.mxu0 %v612
        %951 = vmatprep.subr.bf16.mxu0 0
        %952 = vmatpush1.bf16.msra.mxu0 %v613
        %953 = vmatprep.subr.bf16.mxu0 0
        %954 = vmatpush1.bf16.msra.mxu0 %v614
        %955 = vmatprep.subr.bf16.mxu0 0
        %956 = vmatpush1.bf16.msra.mxu0 %v615
        %957 = vmatprep.subr.bf16.mxu0 0
        %958 = vmatpush1.bf16.msra.mxu0 %v616
        %959 = vmatprep.subr.bf16.mxu0 0
        %960 = vmatpush1.bf16.msra.mxu0 %v617
        %961 = vmatprep.subr.bf16.mxu0 0
        %962 = vmatpush1.bf16.msra.mxu0 %v618
        %963 = vmatprep.mubr.bf16.mxu0 %v928
        %964 = vmatmul.mubr.bf16.gmra.mrb[0].mxu0 %v927
        %v965 = vpop.f32.mrb[0].mxu0
        %v966 = vadd.f32 %v513, %v965
        %v967 = vpop.f32.mrb[0].mxu0
        %v968 = vpop.f32.mrb[0].mxu0
        %v969 = vadd.f32 %v513, %v968
        %v970 = vpop.f32.mrb[0].mxu0
        %971 = vmatprep.mubr.bf16.mxu0 %v930
        %972 = vmatmul.mubr.bf16.gmra.mrb[0].mxu0 %v929
        %v973 = vpop.f32.mrb[0].mxu0
        %v974 = vadd.f32 %v513, %v973
        %v975 = vpop.f32.mrb[0].mxu0
        %v976 = vpop.f32.mrb[0].mxu0
        %v977 = vadd.f32 %v513, %v976
        %v978 = vpop.f32.mrb[0].mxu0
        %979 = vdwg.mxu0
        %v980 = vxor.u32 %v966, 2147483648
        %v981 = vxor.u32 %v969, 2147483648
        %v982 = vxor.u32 %v974, 2147483648
        %v983 = vxor.u32 %v977, 2147483648
        %v984 = vmul.f32 %v980, 1.442695
        %v985 = vpow.pop %v984
        %v986 = vmul.f32 %v981, 1.442695
        %v987 = vpow.pop %v986
        %v988 = vmul.f32 %v982, 1.442695
        %v989 = vpow.pop %v988
        %v990 = vmul.f32 %v983, 1.442695
        %v991 = vpow.pop %v990
        %v992 = vadd.f32 %v985, 1.0
        %v993 = vadd.f32 %v987, 1.0
        %v994 = vadd.f32 %v989, 1.0
        %v995 = vadd.f32 %v991, 1.0
        %v996 = vrcp.pop %v992
        %v997 = vmul.f32 1.0, %v996
        %v998 = vrcp.pop %v993
        %v999 = vmul.f32 1.0, %v998
        %v1000 = vrcp.pop %v994
        %v1001 = vmul.f32 1.0, %v1000
        %v1002 = vrcp.pop %v995
        %v1003 = vmul.f32 1.0, %v1002
        %s1004 = scalar_lea.vmem %s405, 32 [#allocation8]
        %v1005 = vld [vmem:[%s1004] sm:$0xff]
        %v1006 = vld [vmem:[%s1004 + $0x8] sm:$0xff]
        %v1007 = vld [vmem:[%s1004 + $0x10] sm:$0xff]
        %v1008 = vld [vmem:[%s1004 + $0x18] sm:$0xff]
        %vm1009 = vcmp.gt.f32.partialorder %v997, %v1005
        %vm1010 = vcmp.gt.f32.partialorder %v999, %v1006
        %vm1011 = vcmp.gt.f32.partialorder %v1001, %v1007
        %vm1012 = vcmp.gt.f32.partialorder %v1003, %v1008
        %v1013 = vsel %vm1009, 1.0, 0.0
        %v1014 = vsel %vm1010, 1.0, 0.0
        %v1015 = vsel %vm1011, 1.0, 0.0
        %v1016 = vsel %vm1012, 1.0, 0.0
        %v1017 = vpack.c.bf16 %v1014, %v1013
        %v1018 = vpack.c.bf16 %v1016, %v1015
        %1019 = vmatprep.subr.bf16.mxu0 %v771
        %1020 = vmatpush1.bf16.msra.mxu0 %v770
        %1021 = vmatprep.subr.bf16.mxu0 %v773
        %1022 = vmatpush1.bf16.msra.mxu0 %v772
        %1023 = vmatprep.subr.bf16.mxu0 %v775
        %1024 = vmatpush1.bf16.msra.mxu0 %v774
        %1025 = vmatprep.subr.bf16.mxu0 %v777
        %1026 = vmatpush1.bf16.msra.mxu0 %v776
        %1027 = vmatprep.subr.bf16.mxu0 %v779
        %1028 = vmatpush1.bf16.msra.mxu0 %v778
        %1029 = vmatprep.subr.bf16.mxu0 %v781
        %1030 = vmatpush1.bf16.msra.mxu0 %v780
        %1031 = vmatprep.subr.bf16.mxu0 %v783
        %1032 = vmatpush1.bf16.msra.mxu0 %v782
        %1033 = vmatprep.subr.bf16.mxu0 %v785
        %1034 = vmatpush1.bf16.msra.mxu0 %v784
        %1035 = vmatprep.subr.bf16.mxu0 0
        %1036 = vmatpush1.bf16.msra.mxu0 0
        %1037 = vmatprep.subr.bf16.mxu0 0
        %1038 = vmatpush1.bf16.msra.mxu0 0
        %1039 = vmatprep.subr.bf16.mxu0 0
        %1040 = vmatpush1.bf16.msra.mxu0 0
        %1041 = vmatprep.subr.bf16.mxu0 0
        %1042 = vmatpush1.bf16.msra.mxu0 0
        %1043 = vmatprep.subr.bf16.mxu0 0
        %1044 = vmatpush1.bf16.msra.mxu0 0
        %1045 = vmatprep.subr.bf16.mxu0 0
        %1046 = vmatpush1.bf16.msra.mxu0 0
        %1047 = vmatprep.subr.bf16.mxu0 0
        %1048 = vmatpush1.bf16.msra.mxu0 0
        %1049 = vmatprep.subr.bf16.mxu0 0
        %1050 = vmatpush1.bf16.msra.mxu0 0
        %1051 = vmatprep.mubr.bf16.mxu0 0
        %1052 = vmatmul.mubr.bf16.gmra.mrb[0].mxu0 %v1017
        %v1053 = vpop.f32.mrb[0].mxu0
        %v1054 = vadd.f32 %v520, %v1053
        %v1055 = vpop.f32.mrb[0].mxu0
        %v1056 = vadd.f32 %v524, %v1055
        %v1057 = vpop.f32.mrb[0].mxu0
        %v1058 = vadd.f32 %v520, %v1057
        %v1059 = vpop.f32.mrb[0].mxu0
        %v1060 = vadd.f32 %v524, %v1059
        %1061 = vmatprep.mubr.bf16.mxu0 0
        %1062 = vmatmul.mubr.bf16.gmra.mrb[0].mxu0 %v1018
        %v1063 = vpop.f32.mrb[0].mxu0
        %v1064 = vadd.f32 %v520, %v1063
        %v1065 = vpop.f32.mrb[0].mxu0
        %v1066 = vadd.f32 %v524, %v1065
        %v1067 = vpop.f32.mrb[0].mxu0
        %v1068 = vadd.f32 %v520, %v1067
        %v1069 = vpop.f32.mrb[0].mxu0
        %v1070 = vadd.f32 %v524, %v1069
        %1071 = vdwg.mxu0
        %v1072 = vxor.u32 %v1054, 2147483648
        %v1073 = vxor.u32 %v1056, 2147483648
        %v1074 = vxor.u32 %v1058, 2147483648
        %v1075 = vxor.u32 %v1060, 2147483648
        %v1076 = vxor.u32 %v1064, 2147483648
        %v1077 = vxor.u32 %v1066, 2147483648
        %v1078 = vxor.u32 %v1068, 2147483648
        %v1079 = vxor.u32 %v1070, 2147483648
        %v1080 = vmul.f32 %v1072, 1.442695
        %v1081 = vpow.pop %v1080
        %v1082 = vmul.f32 %v1073, 1.442695
        %v1083 = vpow.pop %v1082
        %v1084 = vmul.f32 %v1074, 1.442695
        %v1085 = vpow.pop %v1084
        %v1086 = vmul.f32 %v1075, 1.442695
        %v1087 = vpow.pop %v1086
        %v1088 = vmul.f32 %v1076, 1.442695
        %v1089 = vpow.pop %v1088
        %v1090 = vmul.f32 %v1077, 1.442695
        %v1091 = vpow.pop %v1090
        %v1092 = vmul.f32 %v1078, 1.442695
        %v1093 = vpow.pop %v1092
        %v1094 = vmul.f32 %v1079, 1.442695
        %v1095 = vpow.pop %v1094
        %v1096 = vadd.f32 %v1081, 1.0
        %v1097 = vadd.f32 %v1083, 1.0
        %v1098 = vadd.f32 %v1085, 1.0
        %v1099 = vadd.f32 %v1087, 1.0
        %v1100 = vadd.f32 %v1089, 1.0
        %v1101 = vadd.f32 %v1091, 1.0
        %v1102 = vadd.f32 %v1093, 1.0
        %v1103 = vadd.f32 %v1095, 1.0
        %v1104 = vrcp.pop %v1096
        %v1105 = vmul.f32 1.0, %v1104
        %v1106 = vrcp.pop %v1097
        %v1107 = vmul.f32 1.0, %v1106
        %v1108 = vrcp.pop %v1098
        %v1109 = vmul.f32 1.0, %v1108
        %v1110 = vrcp.pop %v1099
        %v1111 = vmul.f32 1.0, %v1110
        %v1112 = vrcp.pop %v1100
        %v1113 = vmul.f32 1.0, %v1112
        %v1114 = vrcp.pop %v1101
        %v1115 = vmul.f32 1.0, %v1114
        %v1116 = vrcp.pop %v1102
        %v1117 = vmul.f32 1.0, %v1116
        %v1118 = vrcp.pop %v1103
        %v1119 = vmul.f32 1.0, %v1118
        %s1120 = scalar_lea.vmem %s414, 64 [#allocation10]
        %v1121 = vld [vmem:[%s1120] sm:$0xff]
        %v1122 = vld [vmem:[%s1120 + $0x8] sm:$0xff]
        %v1123 = vld [vmem:[%s1120 + $0x10] sm:$0xff]
        %v1124 = vld [vmem:[%s1120 + $0x18] sm:$0xff]
        %v1125 = vld [vmem:[%s1120 + $0x20] sm:$0xff]
        %v1126 = vld [vmem:[%s1120 + $0x28] sm:$0xff]
        %v1127 = vld [vmem:[%s1120 + $0x30] sm:$0xff]
        %v1128 = vld [vmem:[%s1120 + $0x38] sm:$0xff]
        %vm1129 = vcmp.gt.f32.partialorder %v1105, %v1121
        %vm1130 = vcmp.gt.f32.partialorder %v1107, %v1122
        %vm1131 = vcmp.gt.f32.partialorder %v1109, %v1123
        %vm1132 = vcmp.gt.f32.partialorder %v1111, %v1124
        %vm1133 = vcmp.gt.f32.partialorder %v1113, %v1125
        %vm1134 = vcmp.gt.f32.partialorder %v1115, %v1126
        %vm1135 = vcmp.gt.f32.partialorder %v1117, %v1127
        %vm1136 = vcmp.gt.f32.partialorder %v1119, %v1128
        %v1137 = vsel %vm1129, 1.0, 0.0
        %v1138 = vsel %vm1130, 1.0, 0.0
        %v1139 = vsel %vm1131, 1.0, 0.0
        %v1140 = vsel %vm1132, 1.0, 0.0
        %v1141 = vsel %vm1133, 1.0, 0.0
        %v1142 = vsel %vm1134, 1.0, 0.0
        %v1143 = vsel %vm1135, 1.0, 0.0
        %v1144 = vsel %vm1136, 1.0, 0.0
        %v1145 = vpack.c.bf16 %v1139, %v1137
        %v1146 = vpack.c.bf16 %v1140, %v1138
        %v1147 = vpack.c.bf16 %v1143, %v1141
        %v1148 = vpack.c.bf16 %v1144, %v1142
        %1149 = vmatprep.subr.bf16.mxu0 0
        %1150 = vmatpush1.bf16.msra.mxu0 %v603
        %1151 = vmatprep.subr.bf16.mxu0 0
        %1152 = vmatpush1.bf16.msra.mxu0 %v604
        %1153 = vmatprep.subr.bf16.mxu0 0
        %1154 = vmatpush1.bf16.msra.mxu0 %v605
        %1155 = vmatprep.subr.bf16.mxu0 0
        %1156 = vmatpush1.bf16.msra.mxu0 %v606
        %1157 = vmatprep.subr.bf16.mxu0 0
        %1158 = vmatpush1.bf16.msra.mxu0 %v607
        %1159 = vmatprep.subr.bf16.mxu0 0
        %1160 = vmatpush1.bf16.msra.mxu0 %v608
        %1161 = vmatprep.subr.bf16.mxu0 0
        %1162 = vmatpush1.bf16.msra.mxu0 %v609
        %1163 = vmatprep.subr.bf16.mxu0 0
        %1164 = vmatpush1.bf16.msra.mxu0 %v610
        %1165 = vmatprep.subr.bf16.mxu0 0
        %1166 = vmatpush1.bf16.msra.mxu0 %v611
        %1167 = vmatprep.subr.bf16.mxu0 0
        %1168 = vmatpush1.bf16.msra.mxu0 %v612
        %1169 = vmatprep.subr.bf16.mxu0 0
        %1170 = vmatpush1.bf16.msra.mxu0 %v613
        %1171 = vmatprep.subr.bf16.mxu0 0
        %1172 = vmatpush1.bf16.msra.mxu0 %v614
        %1173 = vmatprep.subr.bf16.mxu0 0
        %1174 = vmatpush1.bf16.msra.mxu0 %v615
        %1175 = vmatprep.subr.bf16.mxu0 0
        %1176 = vmatpush1.bf16.msra.mxu0 %v616
        %1177 = vmatprep.subr.bf16.mxu0 0
        %1178 = vmatpush1.bf16.msra.mxu0 %v617
        %1179 = vmatprep.subr.bf16.mxu0 0
        %1180 = vmatpush1.bf16.msra.mxu0 %v618
        %1181 = vmatprep.mubr.bf16.mxu0 %v1146
        %1182 = vmatmul.mubr.bf16.gmra.mrb[0].mxu0 %v1145
        %v1183 = vpop.f32.mrb[0].mxu0
        %v1184 = vadd.f32 %v513, %v1183
        %v1185 = vpop.f32.mrb[0].mxu0
        %v1186 = vpop.f32.mrb[0].mxu0
        %v1187 = vadd.f32 %v513, %v1186
        %v1188 = vpop.f32.mrb[0].mxu0
        %1189 = vmatprep.mubr.bf16.mxu0 %v1148
        %1190 = vmatmul.mubr.bf16.gmra.mrb[0].mxu0 %v1147
        %v1191 = vpop.f32.mrb[0].mxu0
        %v1192 = vadd.f32 %v513, %v1191
        %v1193 = vpop.f32.mrb[0].mxu0
        %v1194 = vpop.f32.mrb[0].mxu0
        %v1195 = vadd.f32 %v513, %v1194
        %v1196 = vpop.f32.mrb[0].mxu0
        %1197 = vdwg.mxu0
        %v1198 = vxor.u32 %v1184, 2147483648
        %v1199 = vxor.u32 %v1187, 2147483648
        %v1200 = vxor.u32 %v1192, 2147483648
        %v1201 = vxor.u32 %v1195, 2147483648
        %v1202 = vmul.f32 %v1198, 1.442695
        %v1203 = vpow.pop %v1202
        %v1204 = vmul.f32 %v1199, 1.442695
        %v1205 = vpow.pop %v1204
        %v1206 = vmul.f32 %v1200, 1.442695
        %v1207 = vpow.pop %v1206
        %v1208 = vmul.f32 %v1201, 1.442695
        %v1209 = vpow.pop %v1208
        %v1210 = vadd.f32 %v1203, 1.0
        %v1211 = vadd.f32 %v1205, 1.0
        %v1212 = vadd.f32 %v1207, 1.0
        %v1213 = vadd.f32 %v1209, 1.0
        %v1214 = vrcp.pop %v1210
        %v1215 = vmul.f32 1.0, %v1214
        %v1216 = vrcp.pop %v1211
        %v1217 = vmul.f32 1.0, %v1216
        %v1218 = vrcp.pop %v1212
        %v1219 = vmul.f32 1.0, %v1218
        %v1220 = vrcp.pop %v1213
        %v1221 = vmul.f32 1.0, %v1220
        %s1222 = scalar_lea.vmem %s405, 64 [#allocation8]
        %v1223 = vld [vmem:[%s1222] sm:$0xff]
        %v1224 = vld [vmem:[%s1222 + $0x8] sm:$0xff]
        %v1225 = vld [vmem:[%s1222 + $0x10] sm:$0xff]
        %v1226 = vld [vmem:[%s1222 + $0x18] sm:$0xff]
        %vm1227 = vcmp.gt.f32.partialorder %v1215, %v1223
        %vm1228 = vcmp.gt.f32.partialorder %v1217, %v1224
        %vm1229 = vcmp.gt.f32.partialorder %v1219, %v1225
        %vm1230 = vcmp.gt.f32.partialorder %v1221, %v1226
        %v1231 = vsel %vm1227, 1.0, 0.0
        %v1232 = vsel %vm1228, 1.0, 0.0
        %v1233 = vsel %vm1229, 1.0, 0.0
        %v1234 = vsel %vm1230, 1.0, 0.0
        %v1235 = vpack.c.bf16 %v1232, %v1231
        %v1236 = vpack.c.bf16 %v1234, %v1233
        %1237 = vmatprep.subr.bf16.mxu0 %v771
        %1238 = vmatpush1.bf16.msra.mxu0 %v770
        %1239 = vmatprep.subr.bf16.mxu0 %v773
        %1240 = vmatpush1.bf16.msra.mxu0 %v772
        %1241 = vmatprep.subr.bf16.mxu0 %v775
        %1242 = vmatpush1.bf16.msra.mxu0 %v774
        %1243 = vmatprep.subr.bf16.mxu0 %v777
        %1244 = vmatpush1.bf16.msra.mxu0 %v776
        %1245 = vmatprep.subr.bf16.mxu0 %v779
        %1246 = vmatpush1.bf16.msra.mxu0 %v778
        %1247 = vmatprep.subr.bf16.mxu0 %v781
        %1248 = vmatpush1.bf16.msra.mxu0 %v780
        %1249 = vmatprep.subr.bf16.mxu0 %v783
        %1250 = vmatpush1.bf16.msra.mxu0 %v782
        %1251 = vmatprep.subr.bf16.mxu0 %v785
        %1252 = vmatpush1.bf16.msra.mxu0 %v784
        %1253 = vmatprep.subr.bf16.mxu0 0
        %1254 = vmatpush1.bf16.msra.mxu0 0
        %1255 = vmatprep.subr.bf16.mxu0 0
        %1256 = vmatpush1.bf16.msra.mxu0 0
        %1257 = vmatprep.subr.bf16.mxu0 0
        %1258 = vmatpush1.bf16.msra.mxu0 0
        %1259 = vmatprep.subr.bf16.mxu0 0
        %1260 = vmatpush1.bf16.msra.mxu0 0
        %1261 = vmatprep.subr.bf16.mxu0 0
        %1262 = vmatpush1.bf16.msra.mxu0 0
        %1263 = vmatprep.subr.bf16.mxu0 0
        %1264 = vmatpush1.bf16.msra.mxu0 0
        %1265 = vmatprep.subr.bf16.mxu0 0
        %1266 = vmatpush1.bf16.msra.mxu0 0
        %1267 = vmatprep.subr.bf16.mxu0 0
        %1268 = vmatpush1.bf16.msra.mxu0 0
        %1269 = vmatprep.mubr.bf16.mxu0 0
        %1270 = vmatmul.mubr.bf16.gmra.mrb[0].mxu0 %v1235
        %v1271 = vpop.f32.mrb[0].mxu0
        %v1272 = vadd.f32 %v520, %v1271
        %v1273 = vpop.f32.mrb[0].mxu0
        %v1274 = vadd.f32 %v524, %v1273
        %v1275 = vpop.f32.mrb[0].mxu0
        %v1276 = vadd.f32 %v520, %v1275
        %v1277 = vpop.f32.mrb[0].mxu0
        %v1278 = vadd.f32 %v524, %v1277
        %1279 = vmatprep.mubr.bf16.mxu0 0
        %1280 = vmatmul.mubr.bf16.gmra.mrb[0].mxu0 %v1236
        %v1281 = vpop.f32.mrb[0].mxu0
        %v1282 = vadd.f32 %v520, %v1281
        %v1283 = vpop.f32.mrb[0].mxu0
        %v1284 = vadd.f32 %v524, %v1283
        %v1285 = vpop.f32.mrb[0].mxu0
        %v1286 = vadd.f32 %v520, %v1285
        %v1287 = vpop.f32.mrb[0].mxu0
        %v1288 = vadd.f32 %v524, %v1287
        %1289 = vdwg.mxu0
        %v1290 = vxor.u32 %v1272, 2147483648
        %v1291 = vxor.u32 %v1274, 2147483648
        %v1292 = vxor.u32 %v1276, 2147483648
        %v1293 = vxor.u32 %v1278, 2147483648
        %v1294 = vxor.u32 %v1282, 2147483648
        %v1295 = vxor.u32 %v1284, 2147483648
        %v1296 = vxor.u32 %v1286, 2147483648
        %v1297 = vxor.u32 %v1288, 2147483648
        %v1298 = vmul.f32 %v1290, 1.442695
        %v1299 = vpow.pop %v1298
        %v1300 = vmul.f32 %v1291, 1.442695
        %v1301 = vpow.pop %v1300
        %v1302 = vmul.f32 %v1292, 1.442695
        %v1303 = vpow.pop %v1302
        %v1304 = vmul.f32 %v1293, 1.442695
        %v1305 = vpow.pop %v1304
        %v1306 = vmul.f32 %v1294, 1.442695
        %v1307 = vpow.pop %v1306
        %v1308 = vmul.f32 %v1295, 1.442695
        %v1309 = vpow.pop %v1308
        %v1310 = vmul.f32 %v1296, 1.442695
        %v1311 = vpow.pop %v1310
        %v1312 = vmul.f32 %v1297, 1.442695
        %v1313 = vpow.pop %v1312
        %v1314 = vadd.f32 %v1299, 1.0
        %v1315 = vadd.f32 %v1301, 1.0
        %v1316 = vadd.f32 %v1303, 1.0
        %v1317 = vadd.f32 %v1305, 1.0
        %v1318 = vadd.f32 %v1307, 1.0
        %v1319 = vadd.f32 %v1309, 1.0
        %v1320 = vadd.f32 %v1311, 1.0
        %v1321 = vadd.f32 %v1313, 1.0
        %v1322 = vrcp.pop %v1314
        %v1323 = vmul.f32 1.0, %v1322
        %v1324 = vrcp.pop %v1315
        %v1325 = vmul.f32 1.0, %v1324
        %v1326 = vrcp.pop %v1316
        %v1327 = vmul.f32 1.0, %v1326
        %v1328 = vrcp.pop %v1317
        %v1329 = vmul.f32 1.0, %v1328
        %v1330 = vrcp.pop %v1318
        %v1331 = vmul.f32 1.0, %v1330
        %v1332 = vrcp.pop %v1319
        %v1333 = vmul.f32 1.0, %v1332
        %v1334 = vrcp.pop %v1320
        %v1335 = vmul.f32 1.0, %v1334
        %v1336 = vrcp.pop %v1321
        %v1337 = vmul.f32 1.0, %v1336
        %s1338 = scalar_lea.vmem %s414, 128 [#allocation10]
        %v1339 = vld [vmem:[%s1338] sm:$0xff]
        %v1340 = vld [vmem:[%s1338 + $0x8] sm:$0xff]
        %v1341 = vld [vmem:[%s1338 + $0x10] sm:$0xff]
        %v1342 = vld [vmem:[%s1338 + $0x18] sm:$0xff]
        %v1343 = vld [vmem:[%s1338 + $0x20] sm:$0xff]
        %v1344 = vld [vmem:[%s1338 + $0x28] sm:$0xff]
        %v1345 = vld [vmem:[%s1338 + $0x30] sm:$0xff]
        %v1346 = vld [vmem:[%s1338 + $0x38] sm:$0xff]
        %vm1347 = vcmp.gt.f32.partialorder %v1323, %v1339
        %vm1348 = vcmp.gt.f32.partialorder %v1325, %v1340
        %vm1349 = vcmp.gt.f32.partialorder %v1327, %v1341
        %vm1350 = vcmp.gt.f32.partialorder %v1329, %v1342
        %vm1351 = vcmp.gt.f32.partialorder %v1331, %v1343
        %vm1352 = vcmp.gt.f32.partialorder %v1333, %v1344
        %vm1353 = vcmp.gt.f32.partialorder %v1335, %v1345
        %vm1354 = vcmp.gt.f32.partialorder %v1337, %v1346
        %v1355 = vsel %vm1347, 1.0, 0.0
        %v1356 = vsel %vm1348, 1.0, 0.0
        %v1357 = vsel %vm1349, 1.0, 0.0
        %v1358 = vsel %vm1350, 1.0, 0.0
        %v1359 = vsel %vm1351, 1.0, 0.0
        %v1360 = vsel %vm1352, 1.0, 0.0
        %v1361 = vsel %vm1353, 1.0, 0.0
        %v1362 = vsel %vm1354, 1.0, 0.0
        %v1363 = vpack.c.bf16 %v1357, %v1355
        %v1364 = vpack.c.bf16 %v1358, %v1356
        %v1365 = vpack.c.bf16 %v1361, %v1359
        %v1366 = vpack.c.bf16 %v1362, %v1360
        %1367 = vmatprep.subr.bf16.mxu0 0
        %1368 = vmatpush1.bf16.msra.mxu0 %v603
        %1369 = vmatprep.subr.bf16.mxu0 0
        %1370 = vmatpush1.bf16.msra.mxu0 %v604
        %1371 = vmatprep.subr.bf16.mxu0 0
        %1372 = vmatpush1.bf16.msra.mxu0 %v605
        %1373 = vmatprep.subr.bf16.mxu0 0
        %1374 = vmatpush1.bf16.msra.mxu0 %v606
        %1375 = vmatprep.subr.bf16.mxu0 0
        %1376 = vmatpush1.bf16.msra.mxu0 %v607
        %1377 = vmatprep.subr.bf16.mxu0 0
        %1378 = vmatpush1.bf16.msra.mxu0 %v608
        %1379 = vmatprep.subr.bf16.mxu0 0
        %1380 = vmatpush1.bf16.msra.mxu0 %v609
        %1381 = vmatprep.subr.bf16.mxu0 0
        %1382 = vmatpush1.bf16.msra.mxu0 %v610
        %1383 = vmatprep.subr.bf16.mxu0 0
        %1384 = vmatpush1.bf16.msra.mxu0 %v611
        %1385 = vmatprep.subr.bf16.mxu0 0
        %1386 = vmatpush1.bf16.msra.mxu0 %v612
        %1387 = vmatprep.subr.bf16.mxu0 0
        %1388 = vmatpush1.bf16.msra.mxu0 %v613
        %1389 = vmatprep.subr.bf16.mxu0 0
        %1390 = vmatpush1.bf16.msra.mxu0 %v614
        %1391 = vmatprep.subr.bf16.mxu0 0
        %1392 = vmatpush1.bf16.msra.mxu0 %v615
        %1393 = vmatprep.subr.bf16.mxu0 0
        %1394 = vmatpush1.bf16.msra.mxu0 %v616
        %1395 = vmatprep.subr.bf16.mxu0 0
        %1396 = vmatpush1.bf16.msra.mxu0 %v617
        %1397 = vmatprep.subr.bf16.mxu0 0
        %1398 = vmatpush1.bf16.msra.mxu0 %v618
        %1399 = vmatprep.mubr.bf16.mxu0 %v1364
        %1400 = vmatmul.mubr.bf16.gmra.mrb[0].mxu0 %v1363
        %v1401 = vpop.f32.mrb[0].mxu0
        %v1402 = vadd.f32 %v513, %v1401
        %v1403 = vpop.f32.mrb[0].mxu0
        %v1404 = vpop.f32.mrb[0].mxu0
        %v1405 = vadd.f32 %v513, %v1404
        %v1406 = vpop.f32.mrb[0].mxu0
        %1407 = vmatprep.mubr.bf16.mxu0 %v1366
        %1408 = vmatmul.mubr.bf16.gmra.mrb[0].mxu0 %v1365
        %v1409 = vpop.f32.mrb[0].mxu0
        %v1410 = vadd.f32 %v513, %v1409
        %v1411 = vpop.f32.mrb[0].mxu0
        %v1412 = vpop.f32.mrb[0].mxu0
        %v1413 = vadd.f32 %v513, %v1412
        %v1414 = vpop.f32.mrb[0].mxu0
        %1415 = vdwg.mxu0
        %v1416 = vxor.u32 %v1402, 2147483648
        %v1417 = vxor.u32 %v1405, 2147483648
        %v1418 = vxor.u32 %v1410, 2147483648
        %v1419 = vxor.u32 %v1413, 2147483648
        %v1420 = vmul.f32 %v1416, 1.442695
        %v1421 = vpow.pop %v1420
        %v1422 = vmul.f32 %v1417, 1.442695
        %v1423 = vpow.pop %v1422
        %v1424 = vmul.f32 %v1418, 1.442695
        %v1425 = vpow.pop %v1424
        %v1426 = vmul.f32 %v1419, 1.442695
        %v1427 = vpow.pop %v1426
        %v1428 = vadd.f32 %v1421, 1.0
        %v1429 = vadd.f32 %v1423, 1.0
        %v1430 = vadd.f32 %v1425, 1.0
        %v1431 = vadd.f32 %v1427, 1.0
        %v1432 = vrcp.pop %v1428
        %v1433 = vmul.f32 1.0, %v1432
        %v1434 = vrcp.pop %v1429
        %v1435 = vmul.f32 1.0, %v1434
        %v1436 = vrcp.pop %v1430
        %v1437 = vmul.f32 1.0, %v1436
        %v1438 = vrcp.pop %v1431
        %v1439 = vmul.f32 1.0, %v1438
        %s1440 = scalar_lea.vmem %s405, 96 [#allocation8]
        %v1441 = vld [vmem:[%s1440] sm:$0xff]
        %v1442 = vld [vmem:[%s1440 + $0x8] sm:$0xff]
        %v1443 = vld [vmem:[%s1440 + $0x10] sm:$0xff]
        %v1444 = vld [vmem:[%s1440 + $0x18] sm:$0xff]
        %vm1445 = vcmp.gt.f32.partialorder %v1433, %v1441
        %vm1446 = vcmp.gt.f32.partialorder %v1435, %v1442
        %vm1447 = vcmp.gt.f32.partialorder %v1437, %v1443
        %vm1448 = vcmp.gt.f32.partialorder %v1439, %v1444
        %v1449 = vsel %vm1445, 1.0, 0.0
        %v1450 = vsel %vm1446, 1.0, 0.0
        %v1451 = vsel %vm1447, 1.0, 0.0
        %v1452 = vsel %vm1448, 1.0, 0.0
        %v1453 = vpack.c.bf16 %v1450, %v1449
        %v1454 = vpack.c.bf16 %v1452, %v1451
        %1455 = vmatprep.subr.bf16.mxu0 %v771
        %1456 = vmatpush1.bf16.msra.mxu0 %v770
        %1457 = vmatprep.subr.bf16.mxu0 %v773
        %1458 = vmatpush1.bf16.msra.mxu0 %v772
        %1459 = vmatprep.subr.bf16.mxu0 %v775
        %1460 = vmatpush1.bf16.msra.mxu0 %v774
        %1461 = vmatprep.subr.bf16.mxu0 %v777
        %1462 = vmatpush1.bf16.msra.mxu0 %v776
        %1463 = vmatprep.subr.bf16.mxu0 %v779
        %1464 = vmatpush1.bf16.msra.mxu0 %v778
        %1465 = vmatprep.subr.bf16.mxu0 %v781
        %1466 = vmatpush1.bf16.msra.mxu0 %v780
        %1467 = vmatprep.subr.bf16.mxu0 %v783
        %1468 = vmatpush1.bf16.msra.mxu0 %v782
        %1469 = vmatprep.subr.bf16.mxu0 %v785
        %1470 = vmatpush1.bf16.msra.mxu0 %v784
        %1471 = vmatprep.subr.bf16.mxu0 0
        %1472 = vmatpush1.bf16.msra.mxu0 0
        %1473 = vmatprep.subr.bf16.mxu0 0
        %1474 = vmatpush1.bf16.msra.mxu0 0
        %1475 = vmatprep.subr.bf16.mxu0 0
        %1476 = vmatpush1.bf16.msra.mxu0 0
        %1477 = vmatprep.subr.bf16.mxu0 0
        %1478 = vmatpush1.bf16.msra.mxu0 0
        %1479 = vmatprep.subr.bf16.mxu0 0
        %1480 = vmatpush1.bf16.msra.mxu0 0
        %1481 = vmatprep.subr.bf16.mxu0 0
        %1482 = vmatpush1.bf16.msra.mxu0 0
        %1483 = vmatprep.subr.bf16.mxu0 0
        %1484 = vmatpush1.bf16.msra.mxu0 0
        %1485 = vmatprep.subr.bf16.mxu0 0
        %1486 = vmatpush1.bf16.msra.mxu0 0
        %1487 = vmatprep.mubr.bf16.mxu0 0
        %1488 = vmatmul.mubr.bf16.gmra.mrb[0].mxu0 %v1453
        %v1489 = vpop.f32.mrb[0].mxu0
        %v1490 = vadd.f32 %v520, %v1489
        %v1491 = vpop.f32.mrb[0].mxu0
        %v1492 = vadd.f32 %v524, %v1491
        %v1493 = vpop.f32.mrb[0].mxu0
        %v1494 = vadd.f32 %v520, %v1493
        %v1495 = vpop.f32.mrb[0].mxu0
        %v1496 = vadd.f32 %v524, %v1495
        %1497 = vmatprep.mubr.bf16.mxu0 0
        %1498 = vmatmul.mubr.bf16.gmra.mrb[0].mxu0 %v1454
        %v1499 = vpop.f32.mrb[0].mxu0
        %v1500 = vadd.f32 %v520, %v1499
        %v1501 = vpop.f32.mrb[0].mxu0
        %v1502 = vadd.f32 %v524, %v1501
        %v1503 = vpop.f32.mrb[0].mxu0
        %v1504 = vadd.f32 %v520, %v1503
        %v1505 = vpop.f32.mrb[0].mxu0
        %v1506 = vadd.f32 %v524, %v1505
        %1507 = vdwg.mxu0
        %v1508 = vxor.u32 %v1490, 2147483648
        %v1509 = vxor.u32 %v1492, 2147483648
        %v1510 = vxor.u32 %v1494, 2147483648
        %v1511 = vxor.u32 %v1496, 2147483648
        %v1512 = vxor.u32 %v1500, 2147483648
        %v1513 = vxor.u32 %v1502, 2147483648
        %v1514 = vxor.u32 %v1504, 2147483648
        %v1515 = vxor.u32 %v1506, 2147483648
        %v1516 = vmul.f32 %v1508, 1.442695
        %v1517 = vpow.pop %v1516
        %v1518 = vmul.f32 %v1509, 1.442695
        %v1519 = vpow.pop %v1518
        %v1520 = vmul.f32 %v1510, 1.442695
        %v1521 = vpow.pop %v1520
        %v1522 = vmul.f32 %v1511, 1.442695
        %v1523 = vpow.pop %v1522
        %v1524 = vmul.f32 %v1512, 1.442695
        %v1525 = vpow.pop %v1524
        %v1526 = vmul.f32 %v1513, 1.442695
        %v1527 = vpow.pop %v1526
        %v1528 = vmul.f32 %v1514, 1.442695
        %v1529 = vpow.pop %v1528
        %v1530 = vmul.f32 %v1515, 1.442695
        %v1531 = vpow.pop %v1530
        %v1532 = vadd.f32 %v1517, 1.0
        %v1533 = vadd.f32 %v1519, 1.0
        %v1534 = vadd.f32 %v1521, 1.0
        %v1535 = vadd.f32 %v1523, 1.0
        %v1536 = vadd.f32 %v1525, 1.0
        %v1537 = vadd.f32 %v1527, 1.0
        %v1538 = vadd.f32 %v1529, 1.0
        %v1539 = vadd.f32 %v1531, 1.0
        %v1540 = vrcp.pop %v1532
        %v1541 = vmul.f32 1.0, %v1540
        %v1542 = vrcp.pop %v1533
        %v1543 = vmul.f32 1.0, %v1542
        %v1544 = vrcp.pop %v1534
        %v1545 = vmul.f32 1.0, %v1544
        %v1546 = vrcp.pop %v1535
        %v1547 = vmul.f32 1.0, %v1546
        %v1548 = vrcp.pop %v1536
        %v1549 = vmul.f32 1.0, %v1548
        %v1550 = vrcp.pop %v1537
        %v1551 = vmul.f32 1.0, %v1550
        %v1552 = vrcp.pop %v1538
        %v1553 = vmul.f32 1.0, %v1552
        %v1554 = vrcp.pop %v1539
        %v1555 = vmul.f32 1.0, %v1554
        %s1556 = scalar_lea.vmem %s414, 192 [#allocation10]
        %v1557 = vld [vmem:[%s1556] sm:$0xff]
        %v1558 = vld [vmem:[%s1556 + $0x8] sm:$0xff]
        %v1559 = vld [vmem:[%s1556 + $0x10] sm:$0xff]
        %v1560 = vld [vmem:[%s1556 + $0x18] sm:$0xff]
        %v1561 = vld [vmem:[%s1556 + $0x20] sm:$0xff]
        %v1562 = vld [vmem:[%s1556 + $0x28] sm:$0xff]
        %v1563 = vld [vmem:[%s1556 + $0x30] sm:$0xff]
        %v1564 = vld [vmem:[%s1556 + $0x38] sm:$0xff]
        %vm1565 = vcmp.gt.f32.partialorder %v1541, %v1557
        %vm1566 = vcmp.gt.f32.partialorder %v1543, %v1558
        %vm1567 = vcmp.gt.f32.partialorder %v1545, %v1559
        %vm1568 = vcmp.gt.f32.partialorder %v1547, %v1560
        %vm1569 = vcmp.gt.f32.partialorder %v1549, %v1561
        %vm1570 = vcmp.gt.f32.partialorder %v1551, %v1562
        %vm1571 = vcmp.gt.f32.partialorder %v1553, %v1563
        %vm1572 = vcmp.gt.f32.partialorder %v1555, %v1564
        %v1573 = vsel %vm1565, 1.0, 0.0
        %v1574 = vsel %vm1566, 1.0, 0.0
        %v1575 = vsel %vm1567, 1.0, 0.0
        %v1576 = vsel %vm1568, 1.0, 0.0
        %v1577 = vsel %vm1569, 1.0, 0.0
        %v1578 = vsel %vm1570, 1.0, 0.0
        %v1579 = vsel %vm1571, 1.0, 0.0
        %v1580 = vsel %vm1572, 1.0, 0.0
        %v1581 = vpack.c.bf16 %v1575, %v1573
        %v1582 = vpack.c.bf16 %v1576, %v1574
        %v1583 = vpack.c.bf16 %v1579, %v1577
        %v1584 = vpack.c.bf16 %v1580, %v1578
        %1585 = vmatprep.subr.bf16.mxu0 0
        %1586 = vmatpush1.bf16.msra.mxu0 %v603
        %1587 = vmatprep.subr.bf16.mxu0 0
        %1588 = vmatpush1.bf16.msra.mxu0 %v604
        %1589 = vmatprep.subr.bf16.mxu0 0
        %1590 = vmatpush1.bf16.msra.mxu0 %v605
        %1591 = vmatprep.subr.bf16.mxu0 0
        %1592 = vmatpush1.bf16.msra.mxu0 %v606
        %1593 = vmatprep.subr.bf16.mxu0 0
        %1594 = vmatpush1.bf16.msra.mxu0 %v607
        %1595 = vmatprep.subr.bf16.mxu0 0
        %1596 = vmatpush1.bf16.msra.mxu0 %v608
        %1597 = vmatprep.subr.bf16.mxu0 0
        %1598 = vmatpush1.bf16.msra.mxu0 %v609
        %1599 = vmatprep.subr.bf16.mxu0 0
        %1600 = vmatpush1.bf16.msra.mxu0 %v610
        %1601 = vmatprep.subr.bf16.mxu0 0
        %1602 = vmatpush1.bf16.msra.mxu0 %v611
        %1603 = vmatprep.subr.bf16.mxu0 0
        %1604 = vmatpush1.bf16.msra.mxu0 %v612
        %1605 = vmatprep.subr.bf16.mxu0 0
        %1606 = vmatpush1.bf16.msra.mxu0 %v613
        %1607 = vmatprep.subr.bf16.mxu0 0
        %1608 = vmatpush1.bf16.msra.mxu0 %v614
        %1609 = vmatprep.subr.bf16.mxu0 0
        %1610 = vmatpush1.bf16.msra.mxu0 %v615
        %1611 = vmatprep.subr.bf16.mxu0 0
        %1612 = vmatpush1.bf16.msra.mxu0 %v616
        %1613 = vmatprep.subr.bf16.mxu0 0
        %1614 = vmatpush1.bf16.msra.mxu0 %v617
        %1615 = vmatprep.subr.bf16.mxu0 0
        %1616 = vmatpush1.bf16.msra.mxu0 %v618
        %1617 = vmatprep.mubr.bf16.mxu0 %v1582
        %1618 = vmatmul.mubr.bf16.gmra.mrb[0].mxu0 %v1581
        %v1619 = vpop.f32.mrb[0].mxu0
        %v1620 = vadd.f32 %v513, %v1619
        %v1621 = vpop.f32.mrb[0].mxu0
        %v1622 = vpop.f32.mrb[0].mxu0
        %v1623 = vadd.f32 %v513, %v1622
        %v1624 = vpop.f32.mrb[0].mxu0
        %1625 = vmatprep.mubr.bf16.mxu0 %v1584
        %1626 = vmatmul.mubr.bf16.gmra.mrb[0].mxu0 %v1583
        %v1627 = vpop.f32.mrb[0].mxu0
        %v1628 = vadd.f32 %v513, %v1627
        %v1629 = vpop.f32.mrb[0].mxu0
        %v1630 = vpop.f32.mrb[0].mxu0
        %v1631 = vadd.f32 %v513, %v1630
        %v1632 = vpop.f32.mrb[0].mxu0
        %1633 = vdwg.mxu0
        %v1634 = vxor.u32 %v1620, 2147483648
        %v1635 = vxor.u32 %v1623, 2147483648
        %v1636 = vxor.u32 %v1628, 2147483648
        %v1637 = vxor.u32 %v1631, 2147483648
        %v1638 = vmul.f32 %v1634, 1.442695
        %v1639 = vpow.pop %v1638
        %v1640 = vmul.f32 %v1635, 1.442695
        %v1641 = vpow.pop %v1640
        %v1642 = vmul.f32 %v1636, 1.442695
        %v1643 = vpow.pop %v1642
        %v1644 = vmul.f32 %v1637, 1.442695
        %v1645 = vpow.pop %v1644
        %v1646 = vadd.f32 %v1639, 1.0
        %v1647 = vadd.f32 %v1641, 1.0
        %v1648 = vadd.f32 %v1643, 1.0
        %v1649 = vadd.f32 %v1645, 1.0
        %v1650 = vrcp.pop %v1646
        %v1651 = vmul.f32 1.0, %v1650
        %v1652 = vrcp.pop %v1647
        %v1653 = vmul.f32 1.0, %v1652
        %v1654 = vrcp.pop %v1648
        %v1655 = vmul.f32 1.0, %v1654
        %v1656 = vrcp.pop %v1649
        %v1657 = vmul.f32 1.0, %v1656
        %s1658 = scalar_lea.vmem %s405, 128 [#allocation8]
        %v1659 = vld [vmem:[%s1658] sm:$0xff]
        %v1660 = vld [vmem:[%s1658 + $0x8] sm:$0xff]
        %v1661 = vld [vmem:[%s1658 + $0x10] sm:$0xff]
        %v1662 = vld [vmem:[%s1658 + $0x18] sm:$0xff]
        %vm1663 = vcmp.gt.f32.partialorder %v1651, %v1659
        %vm1664 = vcmp.gt.f32.partialorder %v1653, %v1660
        %vm1665 = vcmp.gt.f32.partialorder %v1655, %v1661
        %vm1666 = vcmp.gt.f32.partialorder %v1657, %v1662
        %v1667 = vsel %vm1663, 1.0, 0.0
        %v1668 = vsel %vm1664, 1.0, 0.0
        %v1669 = vsel %vm1665, 1.0, 0.0
        %v1670 = vsel %vm1666, 1.0, 0.0
        %v1671 = vpack.c.bf16 %v1668, %v1667
        %v1672 = vpack.c.bf16 %v1670, %v1669
        %1673 = vmatprep.subr.bf16.mxu0 %v771
        %1674 = vmatpush1.bf16.msra.mxu0 %v770
        %1675 = vmatprep.subr.bf16.mxu0 %v773
        %1676 = vmatpush1.bf16.msra.mxu0 %v772
        %1677 = vmatprep.subr.bf16.mxu0 %v775
        %1678 = vmatpush1.bf16.msra.mxu0 %v774
        %1679 = vmatprep.subr.bf16.mxu0 %v777
        %1680 = vmatpush1.bf16.msra.mxu0 %v776
        %1681 = vmatprep.subr.bf16.mxu0 %v779
        %1682 = vmatpush1.bf16.msra.mxu0 %v778
        %1683 = vmatprep.subr.bf16.mxu0 %v781
        %1684 = vmatpush1.bf16.msra.mxu0 %v780
        %1685 = vmatprep.subr.bf16.mxu0 %v783
        %1686 = vmatpush1.bf16.msra.mxu0 %v782
        %1687 = vmatprep.subr.bf16.mxu0 %v785
        %1688 = vmatpush1.bf16.msra.mxu0 %v784
        %1689 = vmatprep.subr.bf16.mxu0 0
        %1690 = vmatpush1.bf16.msra.mxu0 0
        %1691 = vmatprep.subr.bf16.mxu0 0
        %1692 = vmatpush1.bf16.msra.mxu0 0
        %1693 = vmatprep.subr.bf16.mxu0 0
        %1694 = vmatpush1.bf16.msra.mxu0 0
        %1695 = vmatprep.subr.bf16.mxu0 0
        %1696 = vmatpush1.bf16.msra.mxu0 0
        %1697 = vmatprep.subr.bf16.mxu0 0
        %1698 = vmatpush1.bf16.msra.mxu0 0
        %1699 = vmatprep.subr.bf16.mxu0 0
        %1700 = vmatpush1.bf16.msra.mxu0 0
        %1701 = vmatprep.subr.bf16.mxu0 0
        %1702 = vmatpush1.bf16.msra.mxu0 0
        %1703 = vmatprep.subr.bf16.mxu0 0
        %1704 = vmatpush1.bf16.msra.mxu0 0
        %1705 = vmatprep.mubr.bf16.mxu0 0
        %1706 = vmatmul.mubr.bf16.gmra.mrb[0].mxu0 %v1671
        %v1707 = vpop.f32.mrb[0].mxu0
        %v1708 = vadd.f32 %v520, %v1707
        %v1709 = vpop.f32.mrb[0].mxu0
        %v1710 = vadd.f32 %v524, %v1709
        %v1711 = vpop.f32.mrb[0].mxu0
        %v1712 = vadd.f32 %v520, %v1711
        %v1713 = vpop.f32.mrb[0].mxu0
        %v1714 = vadd.f32 %v524, %v1713
        %1715 = vmatprep.mubr.bf16.mxu0 0
        %1716 = vmatmul.mubr.bf16.gmra.mrb[0].mxu0 %v1672
        %v1717 = vpop.f32.mrb[0].mxu0
        %v1718 = vadd.f32 %v520, %v1717
        %v1719 = vpop.f32.mrb[0].mxu0
        %v1720 = vadd.f32 %v524, %v1719
        %v1721 = vpop.f32.mrb[0].mxu0
        %v1722 = vadd.f32 %v520, %v1721
        %v1723 = vpop.f32.mrb[0].mxu0
        %v1724 = vadd.f32 %v524, %v1723
        %1725 = vdwg.mxu0
        %v1726 = vxor.u32 %v1708, 2147483648
        %v1727 = vxor.u32 %v1710, 2147483648
        %v1728 = vxor.u32 %v1712, 2147483648
        %v1729 = vxor.u32 %v1714, 2147483648
        %v1730 = vxor.u32 %v1718, 2147483648
        %v1731 = vxor.u32 %v1720, 2147483648
        %v1732 = vxor.u32 %v1722, 2147483648
        %v1733 = vxor.u32 %v1724, 2147483648
        %v1734 = vmul.f32 %v1726, 1.442695
        %v1735 = vpow.pop %v1734
        %v1736 = vmul.f32 %v1727, 1.442695
        %v1737 = vpow.pop %v1736
        %v1738 = vmul.f32 %v1728, 1.442695
        %v1739 = vpow.pop %v1738
        %v1740 = vmul.f32 %v1729, 1.442695
        %v1741 = vpow.pop %v1740
        %v1742 = vmul.f32 %v1730, 1.442695
        %v1743 = vpow.pop %v1742
        %v1744 = vmul.f32 %v1731, 1.442695
        %v1745 = vpow.pop %v1744
        %v1746 = vmul.f32 %v1732, 1.442695
        %v1747 = vpow.pop %v1746
        %v1748 = vmul.f32 %v1733, 1.442695
        %v1749 = vpow.pop %v1748
        %v1750 = vadd.f32 %v1735, 1.0
        %v1751 = vadd.f32 %v1737, 1.0
        %v1752 = vadd.f32 %v1739, 1.0
        %v1753 = vadd.f32 %v1741, 1.0
        %v1754 = vadd.f32 %v1743, 1.0
        %v1755 = vadd.f32 %v1745, 1.0
        %v1756 = vadd.f32 %v1747, 1.0
        %v1757 = vadd.f32 %v1749, 1.0
        %v1758 = vrcp.pop %v1750
        %v1759 = vmul.f32 1.0, %v1758
        %v1760 = vrcp.pop %v1751
        %v1761 = vmul.f32 1.0, %v1760
        %v1762 = vrcp.pop %v1752
        %v1763 = vmul.f32 1.0, %v1762
        %v1764 = vrcp.pop %v1753
        %v1765 = vmul.f32 1.0, %v1764
        %v1766 = vrcp.pop %v1754
        %v1767 = vmul.f32 1.0, %v1766
        %v1768 = vrcp.pop %v1755
        %v1769 = vmul.f32 1.0, %v1768
        %v1770 = vrcp.pop %v1756
        %v1771 = vmul.f32 1.0, %v1770
        %v1772 = vrcp.pop %v1757
        %v1773 = vmul.f32 1.0, %v1772
        %s1774 = scalar_lea.vmem %s414, 256 [#allocation10]
        %v1775 = vld [vmem:[%s1774] sm:$0xff]
        %v1776 = vld [vmem:[%s1774 + $0x8] sm:$0xff]
        %v1777 = vld [vmem:[%s1774 + $0x10] sm:$0xff]
        %v1778 = vld [vmem:[%s1774 + $0x18] sm:$0xff]
        %v1779 = vld [vmem:[%s1774 + $0x20] sm:$0xff]
        %v1780 = vld [vmem:[%s1774 + $0x28] sm:$0xff]
        %v1781 = vld [vmem:[%s1774 + $0x30] sm:$0xff]
        %v1782 = vld [vmem:[%s1774 + $0x38] sm:$0xff]
        %vm1783 = vcmp.gt.f32.partialorder %v1759, %v1775
        %vm1784 = vcmp.gt.f32.partialorder %v1761, %v1776
        %vm1785 = vcmp.gt.f32.partialorder %v1763, %v1777
        %vm1786 = vcmp.gt.f32.partialorder %v1765, %v1778
        %vm1787 = vcmp.gt.f32.partialorder %v1767, %v1779
        %vm1788 = vcmp.gt.f32.partialorder %v1769, %v1780
        %vm1789 = vcmp.gt.f32.partialorder %v1771, %v1781
        %vm1790 = vcmp.gt.f32.partialorder %v1773, %v1782
        %v1791 = vsel %vm1783, 1.0, 0.0
        %v1792 = vsel %vm1784, 1.0, 0.0
        %v1793 = vsel %vm1785, 1.0, 0.0
        %v1794 = vsel %vm1786, 1.0, 0.0
        %v1795 = vsel %vm1787, 1.0, 0.0
        %v1796 = vsel %vm1788, 1.0, 0.0
        %v1797 = vsel %vm1789, 1.0, 0.0
        %v1798 = vsel %vm1790, 1.0, 0.0
        %1799 = vst [vmem:[%s454] sm:$0xff] %v1791
        %1800 = vst [vmem:[%s454 + $0x8] sm:$0xff] %v1792
        %1801 = vst [vmem:[%s454 + $0x10] sm:$0xff] %v1793
        %1802 = vst [vmem:[%s454 + $0x18] sm:$0xff] %v1794
        %1803 = vst [vmem:[%s454 + $0x20] sm:$0xff] %v1795
        %1804 = vst [vmem:[%s454 + $0x28] sm:$0xff] %v1796
        %1805 = vst [vmem:[%s454 + $0x30] sm:$0xff] %v1797
        %1806 = vst [vmem:[%s454 + $0x38] sm:$0xff] %v1798
        %s1807 = sand.u32 %s198, 1
        %s1808 = scalar_lea.sflag [#allocation4], %s1807
        %s1809 = sand.u32 %s198, 1
        %s1810 = smul.addr %s1809, 64
        %s1811 = scalar_lea.vmem [#allocation11], %s1810
        // Predicated region
        $region69: #{tpu_custom_call.1} parent=47 // pred_check
          %p1812 = pneg %p208
        $region70: #{tpu_custom_call.1} parent=47 // pred_check_branch
          %1814 = sbr.rel (%p1812) target = $region72
        $region71: #{tpu_custom_call.1} parent=47 // pred_region
          %s1815 = smul.u32 4, %s28
          %s1817 = ssub.s32 1024, 1024
          %1818 = vsyncadd %s1808, %s1817
          %s1819 = smul.addr %s1815, 2
          %s1820 = smul.addr %s1819, 128
          %s1821 = scalar_lea.hbm %s7, %s1820
          %s1822 = sshll.u32 %s1811, 4
          %s1823 = int_to_ptr.vmem [resolvable:$true] %s1822
          %1828 = dma.vmem_to_hbm [thread:$0]  %s1823, 1024, %s1821, %s1808, 256, 256, 16
        $region72: #{tpu_custom_call.1} parent=47 // pred_fallthru
          _
      $region48: #{tpu_custom_call.1} parent=5 // pred_fallthru
        _
      %p1829 = scmp.le.s32.totalorder 2, %s23
      // Predicated region
      $region73: #{tpu_custom_call.1} parent=5 // pred_check
        %p1830 = pneg %p1829
      $region74: #{tpu_custom_call.1} parent=5 // pred_check_branch
        %1832 = sbr.rel (%p1830) target = $region76
      $region75: #{tpu_custom_call.1} parent=5 // pred_region
        %s1833 = ssub.s32 %s23, 2
        // Predicated region
        $region77: #{tpu_custom_call.1} parent=75 // pred_check
          %p1834 = pneg %p214
        $region78: #{tpu_custom_call.1} parent=75 // pred_check_branch
          %1836 = sbr.rel (%p1834) target = $region80
        $region79: #{tpu_custom_call.1} parent=75 // pred_region
          %s1837 = sand.u32 %s199, 1
          %s1838 = scalar_lea.sflag [#allocation4], %s1837
          %s1839 = sand.u32 %s199, 1
          %s1840 = smul.addr %s1839, 64
          %s1841 = scalar_lea.vmem [#allocation11], %s1840
          %1842 = dma.done %s1838, 1024
        $region80: #{tpu_custom_call.1} parent=75 // pred_fallthru
          _
      $region76: #{tpu_custom_call.1} parent=5 // pred_fallthru
        _
    $region6: #{tpu_custom_call.1} parent=1 // loop_footer
      %s27 = sadd.s32 1, %s23
    $region7: #{tpu_custom_call.1} parent=1 // loop_footer_branch
      %22 = sbr.rel target = $region3
    $region8: #{tpu_custom_call.1} parent=1 // loop_exit
      _
    %1843 = vsyncpa [#allocation3], 1
    %s1844 = scalar_lea.sflag [#allocation3], 1
    %1845 = vsyncpa %s1844, 1
    %1846 = vsyncpa [#allocation6], 1
    %1847 = vsyncpa [#allocation9], 1
    %s1848 = scalar_lea.sflag [#allocation9], 1
    %1849 = vsyncpa %s1848, 1
    %1850 = vsyncpa [#allocation4], 1
    %s1851 = scalar_lea.sflag [#allocation4], 1
    %1852 = vsyncpa %s1851, 1

</llo_original>
